<compile_context>
chip_gen: v6e
topology: v6e:2x2x1
jax: 0.10.0
libtpu: 0.0.40
codegen_flags: <defaults>
</compile_context>

<pallas_src>
import functools

import numpy as np
import jax
import jax.numpy as jnp
from jax.experimental import pallas as pl
from jax.experimental.pallas import tpu as pltpu

BN_EPS = 1e-5
# Physical channel-group layout of the activation slab.
PHYS_ORDER = ("x", "d1", "d2", "d3", "d4")


# ---------------------------------------------------------------------------
# Geometry helpers (padded, row-extended plane layout)
# ---------------------------------------------------------------------------
def _geometry(d, h, w):
    dp, hp, wp = d + 2, h + 2, w + 2
    hpwp = hp * wp
    rpad = wp + 1                      # row extension so every tap is in-bounds
    r = hpwp + 2 * rpad
    return dp, hp, wp, hpwp, rpad, r


def _build_slab(x_ndhwc, ctot):
    """Embed x into the zero-bordered, row-extended channel slab
    (N, D+2, (H+2)*(W+2) + 2*(W+3), Ctot)."""
    n, d, h, w, cin = x_ndhwc.shape
    dp, hp, wp, hpwp, rpad, r = _geometry(d, h, w)
    xp = jnp.pad(x_ndhwc, ((0, 0), (1, 1), (1, 1), (1, 1), (0, 0)))
    xp = xp.reshape(n, dp, hpwp, cin)
    return jnp.pad(xp, ((0, 0), (0, 0), (rpad, rpad), (0, ctot - cin)))


def _border_mask(d, h, w):
    """1.0 on interior voxels of the padded grid, 0.0 on the zero-padding border."""
    dp, hp, wp, hpwp, _, _ = _geometry(d, h, w)
    m = np.zeros((dp, hp, wp), np.float32)
    m[1:-1, 1:-1, 1:-1] = 1.0
    return jnp.asarray(m.reshape(dp, hpwp, 1))


def _extract_interior(y, d, h, w):
    """(N, D+2, (H+2)*(W+2), C) padded-grid tensor -> (N, D, H, W, C) interior."""
    n, c = y.shape[0], y.shape[-1]
    y = y.reshape(n, d + 2, h + 2, w + 2, c)
    return y[:, 1:-1, 1:-1, 1:-1, :]


def _embed_padded(y_int):
    """(N, D, H, W, C) -> zero-bordered row-extended layout (N, D+2, R, C)."""
    n, d, h, w, c = y_int.shape
    dp, hp, wp, hpwp, rpad, r = _geometry(d, h, w)
    y = jnp.pad(y_int, ((0, 0), (1, 1), (1, 1), (1, 1), (0, 0)))
    y = y.reshape(n, dp, hpwp, c)
    return jnp.pad(y, ((0, 0), (0, 0), (rpad, rpad), (0, 0)))


def _pick_num_planes(dp, r, ctot, budget_bytes=12 * 1024 * 1024):
    """Largest #depth-planes per grid step (divisor of dp, <= 8) whose working
    set fits comfortably in VMEM on every TPU generation (incl. v7x 64 MiB)."""
    lane_bytes = ((ctot + 127) // 128) * 128 * 4
    best = 1
    for p in range(1, min(dp, 8) + 1):
        if dp % p:
            continue
        # double-buffered main+halo inputs + in-kernel concat copy + accumulator
        # + double-buffered output (rough upper bound)
        need = (2 * (p + 2) + (p + 2) + p + 2 * p) * r * lane_bytes
        if need <= budget_bytes:
            best = p
    return best


# ---------------------------------------------------------------------------
# Pallas kernel 1: fused depthwise 3x3x3 + (BN-folded) pointwise + ReLU
# ---------------------------------------------------------------------------
def _fused_ds_conv_kernel(xm_ref, xp_ref, xn_ref, mask_ref, dw_ref, pw_ref,
                          b_ref, o_ref, *, num_planes, wp, hpwp):
    """xm: (1,P,R,C) current depth-planes; xp/xn: (1,1,R,C) halo planes;
    mask: (P,hpwp,1); dw: (27,1,C); pw: (C,G); b: (1,G); o: (1,P,hpwp,G)."""
    p = num_planes
    rpad = wp + 1
    x = jnp.concatenate([xp_ref[0], xm_ref[0], xn_ref[0]], axis=0)  # (P+2, R, C)
    c = x.shape[-1]

    acc = jnp.zeros((p, hpwp, c), jnp.float32)
    k = 0
    for kd in range(3):
        for kh in range(3):
            for kw in range(3):
                r0 = rpad + (kh - 1) * wp + (kw - 1)
                acc = acc + x[kd:kd + p, r0:r0 + hpwp, :] * dw_ref[k]
                k += 1

    pw = pw_ref[...]
    b = b_ref[...]
    for j in range(p):
        y = jnp.dot(acc[j], pw, preferred_element_type=jnp.float32) + b
        y = jnp.maximum(y, 0.0)
        # zero the padding border so the slab keeps its implicit zero-padding
        o_ref[0, j] = y * mask_ref[j]


def fused_ds_conv(slab, mask, dw, pw, b, *, num_planes, wp, hpwp):
    n, dp, r, ctot = slab.shape
    g = pw.shape[1]
    nt = dp // num_planes
    kernel = functools.partial(_fused_ds_conv_kernel,
                               num_planes=num_planes, wp=wp, hpwp=hpwp)
    return pl.pallas_call(
        kernel,
        out_shape=jax.ShapeDtypeStruct((n, dp, hpwp, g), jnp.float32),
        grid=(n, nt),
        in_specs=[
            pl.BlockSpec((1, num_planes, r, ctot), lambda i, t: (i, t, 0, 0)),
            pl.BlockSpec((1, 1, r, ctot),
                         lambda i, t: (i, jnp.maximum(t * num_planes - 1, 0), 0, 0)),
            pl.BlockSpec((1, 1, r, ctot),
                         lambda i, t: (i, jnp.minimum(t * num_planes + num_planes,
                                                      dp - 1), 0, 0)),
            pl.BlockSpec((num_planes, hpwp, 1), lambda i, t: (t, 0, 0)),
            pl.BlockSpec((27, 1, ctot), lambda i, t: (0, 0, 0)),
            pl.BlockSpec((ctot, g), lambda i, t: (0, 0)),
            pl.BlockSpec((1, g), lambda i, t: (0, 0)),
        ],
        out_specs=pl.BlockSpec((1, num_planes, hpwp, g),
                               lambda i, t: (i, t, 0, 0)),
        compiler_params=pltpu.CompilerParams(
            dimension_semantics=("parallel", "parallel")),
    )(slab, slab, slab, mask, dw, pw, b)


# ---------------------------------------------------------------------------
# Pallas kernel 2: fused 1x1x1 conv (BN folded) + ReLU + residual add
# ---------------------------------------------------------------------------
def _fused_pointwise_residual_kernel(x_ref, w_ref, b_ref, o_ref, *,
                                     num_planes, cin):
    w = w_ref[...]
    b = b_ref[...]
    for j in range(num_planes):
        xj = x_ref[0, j]                                     # (R, Ctot)
        y = jnp.dot(xj, w, preferred_element_type=jnp.float32) + b
        y = jnp.maximum(y, 0.0)
        o_ref[0, j] = y + xj[:, :cin]                        # residual = x channels


def fused_pointwise_residual(slab, w, b, *, num_planes, cin):
    n, dp, r, ctot = slab.shape
    nt = dp // num_planes
    kernel = functools.partial(_fused_pointwise_residual_kernel,
                               num_planes=num_planes, cin=cin)
    return pl.pallas_call(
        kernel,
        out_shape=jax.ShapeDtypeStruct((n, dp, r, cin), jnp.float32),
        grid=(n, nt),
        in_specs=[
            pl.BlockSpec((1, num_planes, r, ctot), lambda i, t: (i, t, 0, 0)),
            pl.BlockSpec((ctot, cin), lambda i, t: (0, 0)),
            pl.BlockSpec((1, cin), lambda i, t: (0, 0)),
        ],
        out_specs=pl.BlockSpec((1, num_planes, r, cin), lambda i, t: (i, t, 0, 0)),
        compiler_params=pltpu.CompilerParams(
            dimension_semantics=("parallel", "parallel")),
    )(slab, w, b)


# ---------------------------------------------------------------------------
# Parameter construction (PyTorch-default-style init, BN + biases folded,
# channel groups remapped from the PyTorch concat order to the slab layout)
# ---------------------------------------------------------------------------
def _uniform(key, shape, bound):
    return jax.random.uniform(key, shape, jnp.float32, minval=-bound, maxval=bound)


def _bn_inference(channels):
    # TODO(synk): training-mode batch statistics are not reproduced; this folds
    # the PyTorch-default running statistics (gamma=1, beta=0, mean=0, var=1).
    gamma = jnp.ones((channels,), jnp.float32)
    beta = jnp.zeros((channels,), jnp.float32)
    mean = jnp.zeros((channels,), jnp.float32)
    var = jnp.ones((channels,), jnp.float32)
    scale = gamma / jnp.sqrt(var + BN_EPS)
    shift = beta - mean * scale
    return scale, shift


def _to_physical(w, pt_order, sizes, axis):
    """Re-order a weight whose channel `axis` follows the PyTorch concat order
    `pt_order` into the physical slab order PHYS_ORDER, zero-filling channel
    groups this layer does not consume (their slab data is zero anyway)."""
    parts_by_name, pos = {}, 0
    for name in pt_order:
        sz = sizes[name]
        parts_by_name[name] = jax.lax.slice_in_dim(w, pos, pos + sz, axis=axis)
        pos += sz
    parts = []
    for name in PHYS_ORDER:
        if name in parts_by_name:
            parts.append(parts_by_name[name])
        else:
            shape = list(w.shape)
            shape[axis] = sizes[name]
            parts.append(jnp.zeros(shape, w.dtype))
    return jnp.concatenate(parts, axis=axis)


def _init_ds_con(key, pt_order, sizes, g):
    ck = sum(sizes[name] for name in pt_order)
    ctot = sum(sizes[name] for name in PHYS_ORDER)
    k1, k2, k3, k4 = jax.random.split(key, 4)
    bd = 1.0 / np.sqrt(27.0)
    dw_w = _uniform(k1, (ck, 3, 3, 3), bd)        # PyTorch (ck, 1, 3, 3, 3)
    dw_b = _uniform(k2, (ck,), bd)
    bp = 1.0 / np.sqrt(ck)
    pw_w = _uniform(k3, (g, ck), bp)              # PyTorch (g, ck, 1, 1, 1)
    pw_b = _uniform(k4, (g,), bp)
    scale, shift = _bn_inference(g)
    # relu(BN(pw(dw(x) + dw_b) + pw_b)) == relu(dw(x) @ w_eff + b_eff)
    w_eff = jnp.transpose(pw_w * scale[:, None], (1, 0))       # (ck, g)
    b_eff = scale * (pw_b + pw_w @ dw_b) + shift                # (g,)
    dw27 = jnp.transpose(dw_w, (1, 2, 3, 0)).reshape(27, ck)    # (kd,kh,kw)-major
    dw27 = _to_physical(dw27, pt_order, sizes, axis=1)          # (27, ctot)
    w_eff = _to_physical(w_eff, pt_order, sizes, axis=0)        # (ctot, g)
    return dict(dw=dw27.reshape(27, 1, ctot), pw=w_eff, b=b_eff.reshape(1, g))


def _init_conv1(key, pt_order, sizes, cin):
    ctot = sum(sizes[name] for name in PHYS_ORDER)
    k1, k2 = jax.random.split(key)
    bc = 1.0 / np.sqrt(ctot)
    w = _uniform(k1, (cin, ctot), bc)             # PyTorch (cin, ctot, 1, 1, 1)
    b = _uniform(k2, (cin,), bc)
    scale, shift = _bn_inference(cin)
    w_eff = jnp.transpose(w * scale[:, None], (1, 0))           # (ctot, cin)
    b_eff = scale * b + shift
    w_eff = _to_physical(w_eff, pt_order, sizes, axis=0)
    return dict(w=w_eff, b=b_eff.reshape(1, cin))


def init_drdb_sequential(key, in_channels, g):
    sizes = {"x": in_channels, "d1": g, "d2": g, "d3": g, "d4": g}
    # PyTorch concatenation orders of each layer's input channels.
    pt_orders = {
        "ds1": ("x",),
        "ds2": ("x", "d1"),
        "ds3": ("d2", "x", "d1"),
        "ds4": ("d3", "d2", "x", "d1"),
        "c1": ("d4", "d3", "d2", "x", "d1"),
    }
    k1, k2, k3, k4, k5 = jax.random.split(key, 5)
    return dict(
        ds1=_init_ds_con(k1, pt_orders["ds1"], sizes, g),
        ds2=_init_ds_con(k2, pt_orders["ds2"], sizes, g),
        ds3=_init_ds_con(k3, pt_orders["ds3"], sizes, g),
        ds4=_init_ds_con(k4, pt_orders["ds4"], sizes, g),
        c1=_init_conv1(k5, pt_orders["c1"], sizes, in_channels),
    )


# ---------------------------------------------------------------------------
# DRDB_sequential forward
# ---------------------------------------------------------------------------
def drdb_sequential_forward(params, x_ncdhw, stride=2):
    """x1=ds_con1(x); x1=cat([x,x1]); x2=ds_con2(x1); x2=cat([x2,x1]);
    x3=ds_con3(x2); x3=cat([x3,x2]); x4=ds_con4(x3); x4=cat([x4,x3]);
    out = relu(bn(conv1(x4))) + x   (all concatenations realised as writes into
    one preallocated channel slab; channel groups re-ordered at fold time)."""
    cin = params["c1"]["w"].shape[1]
    g = params["ds1"]["pw"].shape[1]
    ctot = params["c1"]["w"].shape[0]

    x = jnp.transpose(x_ncdhw, (0, 2, 3, 4, 1)).astype(jnp.float32)   # NDHWC
    n, d, h, w, _ = x.shape
    dp, hp, wp, hpwp, rpad, r = _geometry(d, h, w)

    slab = _build_slab(x, ctot)                        # (N, Dp, R, Ctot)
    mask = _border_mask(d, h, w)                       # (Dp, HpWp, 1)
    num_planes = _pick_num_planes(dp, r, ctot)

    offsets = [cin, cin + g, cin + 2 * g, cin + 3 * g]
    for idx, name in enumerate(("ds1", "ds2", "ds3", "ds4")):
        p = params[name]
        y = fused_ds_conv(slab, mask, p["dw"], p["pw"], p["b"],
                          num_planes=num_planes, wp=wp, hpwp=hpwp)
        c0 = offsets[idx]
        if stride == 1:
            # y already lives on the zero-bordered padded grid -> write in place.
            slab = slab.at[:, :, rpad:rpad + hpwp, c0:c0 + g].set(y)
        else:
            # stride-s depthwise conv == stride-1 conv sub-sampled every s-th
            # voxel; torch.cat([x, ds(x)]) then requires the strided output to
            # keep the input spatial size (true only for 1x1x1 volumes).
            y_s = _extract_interior(y, d, h, w)[:, ::stride, ::stride, ::stride, :]
            if y_s.shape[1:4] != (d, h, w):
                raise ValueError(
                    f"DS-conv with stride={stride} maps spatial {(d, h, w)} to "
                    f"{y_s.shape[1:4]}; torch.cat in DRDB_sequential.forward "
                    "requires them to match (only 1x1x1 inputs are admissible).")
            slab = slab.at[:, :, :, c0:c0 + g].set(_embed_padded(y_s))

    out = fused_pointwise_residual(slab, params["c1"]["w"], params["c1"]["b"],
                                   num_planes=num_planes, cin=cin)
    out = _extract_interior(out[:, :, rpad:rpad + hpwp, :], d, h, w)
    return jnp.transpose(out, (0, 4, 1, 2, 3))          # back to NCDHW


# ---------------------------------------------------------------------------
# Pure-NumPy float64 reference on the same folded parameters (for validation)
# ---------------------------------------------------------------------------
def drdb_reference_np(params, x_ncdhw, stride=2):
    p = jax.tree_util.tree_map(lambda a: np.asarray(a, np.float64), params)
    cin = p["c1"]["w"].shape[1]
    g = p["ds1"]["pw"].shape[1]
    ctot = p["c1"]["w"].shape[0]
    x = np.transpose(np.asarray(x_ncdhw, np.float64), (0, 2, 3, 4, 1))
    n, d, h, w, _ = x.shape
    slab = np.zeros((n, d, h, w, ctot), np.float64)
    slab[..., :cin] = x
    offsets = [cin, cin + g, cin + 2 * g, cin + 3 * g]
    for idx, name in enumerate(("ds1", "ds2", "ds3", "ds4")):
        q = p[name]
        dw = q["dw"].reshape(27, ctot)
        xp = np.pad(slab, ((0, 0), (1, 1), (1, 1), (1, 1), (0, 0)))
        acc = np.zeros_like(slab)
        k = 0
        for kd in range(3):
            for kh in range(3):
                for kw in range(3):
                    acc += xp[:, kd:kd + d, kh:kh + h, kw:kw + w, :] * dw[k]
                    k += 1
        if stride != 1:
            acc = acc[:, ::stride, ::stride, ::stride, :]
        y = np.maximum(acc @ q["pw"] + q["b"][0], 0.0)
        assert y.shape[1:4] == (d, h, w)
        slab[..., offsets[idx]:offsets[idx] + g] = y
    y = np.maximum(slab @ p["c1"]["w"] + p["c1"]["b"][0], 0.0) + x
    return np.transpose(y, (0, 4, 1, 2, 3))


# ---------------------------------------------------------------------------
if __name__ == "__main__":
    in_channels, g = 17, 8          # channel sizes of PLS-Net's first DRDB stage
    root = jax.random.PRNGKey(0)
    k_params, k_small, k_big = jax.random.split(root, 3)
    params = init_drdb_sequential(k_params, in_channels, g)

    # (1) Faithful reference configuration: every ds_con uses stride=2, so the
    #     reference's torch.cat([x, ds_con(x)], 1) only shape-checks when the
    #     stride-2 conv preserves the spatial size, i.e. for 1x1x1 volumes.
    x_small = jax.random.normal(k_small, (2, in_channels, 1, 1, 1), jnp.float32)
    fwd_s2 = jax.jit(functools.partial(drdb_sequential_forward, stride=2))
    y_small = jax.block_until_ready(fwd_s2(params, x_small))
    assert y_small.shape == (2, in_channels, 1, 1, 1)
    assert bool(jnp.all(jnp.isfinite(y_small)))
    ref_small = drdb_reference_np(params, np.asarray(x_small), stride=2)
    assert np.allclose(np.asarray(y_small), ref_small, atol=2e-2, rtol=2e-2)

    # (2) Kernel validation at a realistic tile: stride=1 preserves the spatial
    #     size, so the dense connections are well defined at 16^3 and the fused
    #     Pallas kernels are exercised with non-trivial blocks.
    x_big = jax.random.normal(k_big, (2, in_channels, 16, 16, 16), jnp.float32)
    fwd_s1 = jax.jit(functools.partial(drdb_sequential_forward, stride=1))
    y_big = jax.block_until_ready(fwd_s1(params, x_big))
    assert y_big.shape == (2, in_channels, 16, 16, 16)
    assert bool(jnp.all(jnp.isfinite(y_big)))
    ref_big = drdb_reference_np(params, np.asarray(x_big), stride=1)
    assert np.allclose(np.asarray(y_big), ref_big, atol=2e-2, rtol=2e-2)

    print("KERNEL_OK")
</pallas_src>

<mosaic_0001>
module attributes {stable_mosaic.version = 11 : i64} {
  func.func @_fused_ds_conv_kernel(%arg0: i32, %arg1: i32, %arg2: memref<1x3x17x49xf32, #tpu.memory_space<vmem>>, %arg3: memref<1x1x17x49xf32, #tpu.memory_space<vmem>>, %arg4: memref<1x1x17x49xf32, #tpu.memory_space<vmem>>, %arg5: memref<3x9x1xf32, #tpu.memory_space<vmem>>, %arg6: memref<27x1x49xf32, #tpu.memory_space<vmem>>, %arg7: memref<49x8xf32, #tpu.memory_space<vmem>>, %arg8: memref<1x8xf32, #tpu.memory_space<vmem>>, %arg9: memref<1x3x9x8xf32, #tpu.memory_space<vmem>>) attributes {dimension_semantics = [#tpu.dimension_semantics<parallel>, #tpu.dimension_semantics<parallel>], iteration_bounds = array<i64: 2, 1>, scalar_prefetch = 0 : i64, scratch_operands = 0 : i64, tpu.core_type = #tpu.core_type<tc>, window_params = [{transform_indices = @transform_0, window_bounds = array<i64: 1, 3, 17, 49>}, {transform_indices = @transform_1, window_bounds = array<i64: 1, 1, 17, 49>}, {transform_indices = @transform_2, window_bounds = array<i64: 1, 1, 17, 49>}, {transform_indices = @transform_3, window_bounds = array<i64: 3, 9, 1>}, {pipeline_mode = #tpu.pipeline_mode<synchronous>, transform_indices = @transform_4, window_bounds = array<i64: 27, 1, 49>}, {pipeline_mode = #tpu.pipeline_mode<synchronous>, transform_indices = @transform_5, window_bounds = array<i64: 49, 8>}, {pipeline_mode = #tpu.pipeline_mode<synchronous>, transform_indices = @transform_6, window_bounds = array<i64: 1, 8>}, {transform_indices = @transform_7, window_bounds = array<i64: 1, 3, 9, 8>}]} {
    %c0 = arith.constant 0 : index
    %c0_0 = arith.constant 0 : index
    %c0_1 = arith.constant 0 : index
    %c0_2 = arith.constant 0 : index
    %0 = vector.load %arg3[%c0, %c0_0, %c0_1, %c0_2] : memref<1x1x17x49xf32, #tpu.memory_space<vmem>>, vector<1x1x17x49xf32>
    %1 = vector.shape_cast %0 : vector<1x1x17x49xf32> to vector<1x17x49xf32>
    %c0_3 = arith.constant 0 : index
    %c0_4 = arith.constant 0 : index
    %c0_5 = arith.constant 0 : index
    %c0_6 = arith.constant 0 : index
    %2 = vector.load %arg2[%c0_3, %c0_4, %c0_5, %c0_6] : memref<1x3x17x49xf32, #tpu.memory_space<vmem>>, vector<1x3x17x49xf32>
    %3 = vector.shape_cast %2 : vector<1x3x17x49xf32> to vector<3x17x49xf32>
    %c0_7 = arith.constant 0 : index
    %c0_8 = arith.constant 0 : index
    %c0_9 = arith.constant 0 : index
    %c0_10 = arith.constant 0 : index
    %4 = vector.load %arg4[%c0_7, %c0_8, %c0_9, %c0_10] : memref<1x1x17x49xf32, #tpu.memory_space<vmem>>, vector<1x1x17x49xf32>
    %5 = vector.shape_cast %4 : vector<1x1x17x49xf32> to vector<1x17x49xf32>
    %6 = tpu.concatenate %1, %3, %5 in 0 : vector<1x17x49xf32>, vector<3x17x49xf32>, vector<1x17x49xf32> -> vector<5x17x49xf32>
    %cst = arith.constant 0.000000e+00 : f32
    %7 = vector.broadcast %cst : f32 to vector<3x9x49xf32>
    %8 = vector.extract_strided_slice %6 {offsets = [0, 0, 0], sizes = [3, 9, 49], strides = [1, 1, 1]} : vector<5x17x49xf32> to vector<3x9x49xf32>
    %c0_11 = arith.constant 0 : index
    %c0_12 = arith.constant 0 : index
    %c0_13 = arith.constant 0 : index
    %9 = vector.load %arg6[%c0_11, %c0_12, %c0_13] : memref<27x1x49xf32, #tpu.memory_space<vmem>>, vector<1x1x49xf32>
    %10 = vector.shape_cast %9 : vector<1x1x49xf32> to vector<1x49xf32>
    %11 = vector.shape_cast %10 : vector<1x49xf32> to vector<1x1x49xf32>
    %12 = vector.broadcast %11 : vector<1x1x49xf32> to vector<3x9x49xf32>
    %13 = arith.mulf %8, %12 : vector<3x9x49xf32>
    %14 = arith.addf %7, %13 : vector<3x9x49xf32>
    %15 = vector.extract_strided_slice %6 {offsets = [0, 1, 0], sizes = [3, 9, 49], strides = [1, 1, 1]} : vector<5x17x49xf32> to vector<3x9x49xf32>
    %c1 = arith.constant 1 : index
    %c0_14 = arith.constant 0 : index
    %c0_15 = arith.constant 0 : index
    %16 = vector.load %arg6[%c1, %c0_14, %c0_15] : memref<27x1x49xf32, #tpu.memory_space<vmem>>, vector<1x1x49xf32>
    %17 = vector.shape_cast %16 : vector<1x1x49xf32> to vector<1x49xf32>
    %18 = vector.shape_cast %17 : vector<1x49xf32> to vector<1x1x49xf32>
    %19 = vector.broadcast %18 : vector<1x1x49xf32> to vector<3x9x49xf32>
    %20 = arith.mulf %15, %19 : vector<3x9x49xf32>
    %21 = arith.addf %14, %20 : vector<3x9x49xf32>
    %22 = vector.extract_strided_slice %6 {offsets = [0, 2, 0], sizes = [3, 9, 49], strides = [1, 1, 1]} : vector<5x17x49xf32> to vector<3x9x49xf32>
    %c2 = arith.constant 2 : index
    %c0_16 = arith.constant 0 : index
    %c0_17 = arith.constant 0 : index
    %23 = vector.load %arg6[%c2, %c0_16, %c0_17] : memref<27x1x49xf32, #tpu.memory_space<vmem>>, vector<1x1x49xf32>
    %24 = vector.shape_cast %23 : vector<1x1x49xf32> to vector<1x49xf32>
    %25 = vector.shape_cast %24 : vector<1x49xf32> to vector<1x1x49xf32>
    %26 = vector.broadcast %25 : vector<1x1x49xf32> to vector<3x9x49xf32>
    %27 = arith.mulf %22, %26 : vector<3x9x49xf32>
    %28 = arith.addf %21, %27 : vector<3x9x49xf32>
    %29 = vector.extract_strided_slice %6 {offsets = [0, 3, 0], sizes = [3, 9, 49], strides = [1, 1, 1]} : vector<5x17x49xf32> to vector<3x9x49xf32>
    %c3 = arith.constant 3 : index
    %c0_18 = arith.constant 0 : index
    %c0_19 = arith.constant 0 : index
    %30 = vector.load %arg6[%c3, %c0_18, %c0_19] : memref<27x1x49xf32, #tpu.memory_space<vmem>>, vector<1x1x49xf32>
    %31 = vector.shape_cast %30 : vector<1x1x49xf32> to vector<1x49xf32>
    %32 = vector.shape_cast %31 : vector<1x49xf32> to vector<1x1x49xf32>
    %33 = vector.broadcast %32 : vector<1x1x49xf32> to vector<3x9x49xf32>
    %34 = arith.mulf %29, %33 : vector<3x9x49xf32>
    %35 = arith.addf %28, %34 : vector<3x9x49xf32>
    %36 = vector.extract_strided_slice %6 {offsets = [0, 4, 0], sizes = [3, 9, 49], strides = [1, 1, 1]} : vector<5x17x49xf32> to vector<3x9x49xf32>
    %c4 = arith.constant 4 : index
    %c0_20 = arith.constant 0 : index
    %c0_21 = arith.constant 0 : index
    %37 = vector.load %arg6[%c4, %c0_20, %c0_21] : memref<27x1x49xf32, #tpu.memory_space<vmem>>, vector<1x1x49xf32>
    %38 = vector.shape_cast %37 : vector<1x1x49xf32> to vector<1x49xf32>
    %39 = vector.shape_cast %38 : vector<1x49xf32> to vector<1x1x49xf32>
    %40 = vector.broadcast %39 : vector<1x1x49xf32> to vector<3x9x49xf32>
    %41 = arith.mulf %36, %40 : vector<3x9x49xf32>
    %42 = arith.addf %35, %41 : vector<3x9x49xf32>
    %43 = vector.extract_strided_slice %6 {offsets = [0, 5, 0], sizes = [3, 9, 49], strides = [1, 1, 1]} : vector<5x17x49xf32> to vector<3x9x49xf32>
    %c5 = arith.constant 5 : index
    %c0_22 = arith.constant 0 : index
    %c0_23 = arith.constant 0 : index
    %44 = vector.load %arg6[%c5, %c0_22, %c0_23] : memref<27x1x49xf32, #tpu.memory_space<vmem>>, vector<1x1x49xf32>
    %45 = vector.shape_cast %44 : vector<1x1x49xf32> to vector<1x49xf32>
    %46 = vector.shape_cast %45 : vector<1x49xf32> to vector<1x1x49xf32>
    %47 = vector.broadcast %46 : vector<1x1x49xf32> to vector<3x9x49xf32>
    %48 = arith.mulf %43, %47 : vector<3x9x49xf32>
    %49 = arith.addf %42, %48 : vector<3x9x49xf32>
    %50 = vector.extract_strided_slice %6 {offsets = [0, 6, 0], sizes = [3, 9, 49], strides = [1, 1, 1]} : vector<5x17x49xf32> to vector<3x9x49xf32>
    %c6 = arith.constant 6 : index
    %c0_24 = arith.constant 0 : index
    %c0_25 = arith.constant 0 : index
    %51 = vector.load %arg6[%c6, %c0_24, %c0_25] : memref<27x1x49xf32, #tpu.memory_space<vmem>>, vector<1x1x49xf32>
    %52 = vector.shape_cast %51 : vector<1x1x49xf32> to vector<1x49xf32>
    %53 = vector.shape_cast %52 : vector<1x49xf32> to vector<1x1x49xf32>
    %54 = vector.broadcast %53 : vector<1x1x49xf32> to vector<3x9x49xf32>
    %55 = arith.mulf %50, %54 : vector<3x9x49xf32>
    %56 = arith.addf %49, %55 : vector<3x9x49xf32>
    %57 = vector.extract_strided_slice %6 {offsets = [0, 7, 0], sizes = [3, 9, 49], strides = [1, 1, 1]} : vector<5x17x49xf32> to vector<3x9x49xf32>
    %c7 = arith.constant 7 : index
    %c0_26 = arith.constant 0 : index
    %c0_27 = arith.constant 0 : index
    %58 = vector.load %arg6[%c7, %c0_26, %c0_27] : memref<27x1x49xf32, #tpu.memory_space<vmem>>, vector<1x1x49xf32>
    %59 = vector.shape_cast %58 : vector<1x1x49xf32> to vector<1x49xf32>
    %60 = vector.shape_cast %59 : vector<1x49xf32> to vector<1x1x49xf32>
    %61 = vector.broadcast %60 : vector<1x1x49xf32> to vector<3x9x49xf32>
    %62 = arith.mulf %57, %61 : vector<3x9x49xf32>
    %63 = arith.addf %56, %62 : vector<3x9x49xf32>
    %64 = vector.extract_strided_slice %6 {offsets = [0, 8, 0], sizes = [3, 9, 49], strides = [1, 1, 1]} : vector<5x17x49xf32> to vector<3x9x49xf32>
    %c8 = arith.constant 8 : index
    %c0_28 = arith.constant 0 : index
    %c0_29 = arith.constant 0 : index
    %65 = vector.load %arg6[%c8, %c0_28, %c0_29] : memref<27x1x49xf32, #tpu.memory_space<vmem>>, vector<1x1x49xf32>
    %66 = vector.shape_cast %65 : vector<1x1x49xf32> to vector<1x49xf32>
    %67 = vector.shape_cast %66 : vector<1x49xf32> to vector<1x1x49xf32>
    %68 = vector.broadcast %67 : vector<1x1x49xf32> to vector<3x9x49xf32>
    %69 = arith.mulf %64, %68 : vector<3x9x49xf32>
    %70 = arith.addf %63, %69 : vector<3x9x49xf32>
    %71 = vector.extract_strided_slice %6 {offsets = [1, 0, 0], sizes = [3, 9, 49], strides = [1, 1, 1]} : vector<5x17x49xf32> to vector<3x9x49xf32>
    %c9 = arith.constant 9 : index
    %c0_30 = arith.constant 0 : index
    %c0_31 = arith.constant 0 : index
    %72 = vector.load %arg6[%c9, %c0_30, %c0_31] : memref<27x1x49xf32, #tpu.memory_space<vmem>>, vector<1x1x49xf32>
    %73 = vector.shape_cast %72 : vector<1x1x49xf32> to vector<1x49xf32>
    %74 = vector.shape_cast %73 : vector<1x49xf32> to vector<1x1x49xf32>
    %75 = vector.broadcast %74 : vector<1x1x49xf32> to vector<3x9x49xf32>
    %76 = arith.mulf %71, %75 : vector<3x9x49xf32>
    %77 = arith.addf %70, %76 : vector<3x9x49xf32>
    %78 = vector.extract_strided_slice %6 {offsets = [1, 1, 0], sizes = [3, 9, 49], strides = [1, 1, 1]} : vector<5x17x49xf32> to vector<3x9x49xf32>
    %c10 = arith.constant 10 : index
    %c0_32 = arith.constant 0 : index
    %c0_33 = arith.constant 0 : index
    %79 = vector.load %arg6[%c10, %c0_32, %c0_33] : memref<27x1x49xf32, #tpu.memory_space<vmem>>, vector<1x1x49xf32>
    %80 = vector.shape_cast %79 : vector<1x1x49xf32> to vector<1x49xf32>
    %81 = vector.shape_cast %80 : vector<1x49xf32> to vector<1x1x49xf32>
    %82 = vector.broadcast %81 : vector<1x1x49xf32> to vector<3x9x49xf32>
    %83 = arith.mulf %78, %82 : vector<3x9x49xf32>
    %84 = arith.addf %77, %83 : vector<3x9x49xf32>
    %85 = vector.extract_strided_slice %6 {offsets = [1, 2, 0], sizes = [3, 9, 49], strides = [1, 1, 1]} : vector<5x17x49xf32> to vector<3x9x49xf32>
    %c11 = arith.constant 11 : index
    %c0_34 = arith.constant 0 : index
    %c0_35 = arith.constant 0 : index
    %86 = vector.load %arg6[%c11, %c0_34, %c0_35] : memref<27x1x49xf32, #tpu.memory_space<vmem>>, vector<1x1x49xf32>
    %87 = vector.shape_cast %86 : vector<1x1x49xf32> to vector<1x49xf32>
    %88 = vector.shape_cast %87 : vector<1x49xf32> to vector<1x1x49xf32>
    %89 = vector.broadcast %88 : vector<1x1x49xf32> to vector<3x9x49xf32>
    %90 = arith.mulf %85, %89 : vector<3x9x49xf32>
    %91 = arith.addf %84, %90 : vector<3x9x49xf32>
    %92 = vector.extract_strided_slice %6 {offsets = [1, 3, 0], sizes = [3, 9, 49], strides = [1, 1, 1]} : vector<5x17x49xf32> to vector<3x9x49xf32>
    %c12 = arith.constant 12 : index
    %c0_36 = arith.constant 0 : index
    %c0_37 = arith.constant 0 : index
    %93 = vector.load %arg6[%c12, %c0_36, %c0_37] : memref<27x1x49xf32, #tpu.memory_space<vmem>>, vector<1x1x49xf32>
    %94 = vector.shape_cast %93 : vector<1x1x49xf32> to vector<1x49xf32>
    %95 = vector.shape_cast %94 : vector<1x49xf32> to vector<1x1x49xf32>
    %96 = vector.broadcast %95 : vector<1x1x49xf32> to vector<3x9x49xf32>
    %97 = arith.mulf %92, %96 : vector<3x9x49xf32>
    %98 = arith.addf %91, %97 : vector<3x9x49xf32>
    %99 = vector.extract_strided_slice %6 {offsets = [1, 4, 0], sizes = [3, 9, 49], strides = [1, 1, 1]} : vector<5x17x49xf32> to vector<3x9x49xf32>
    %c13 = arith.constant 13 : index
    %c0_38 = arith.constant 0 : index
    %c0_39 = arith.constant 0 : index
    %100 = vector.load %arg6[%c13, %c0_38, %c0_39] : memref<27x1x49xf32, #tpu.memory_space<vmem>>, vector<1x1x49xf32>
    %101 = vector.shape_cast %100 : vector<1x1x49xf32> to vector<1x49xf32>
    %102 = vector.shape_cast %101 : vector<1x49xf32> to vector<1x1x49xf32>
    %103 = vector.broadcast %102 : vector<1x1x49xf32> to vector<3x9x49xf32>
    %104 = arith.mulf %99, %103 : vector<3x9x49xf32>
    %105 = arith.addf %98, %104 : vector<3x9x49xf32>
    %106 = vector.extract_strided_slice %6 {offsets = [1, 5, 0], sizes = [3, 9, 49], strides = [1, 1, 1]} : vector<5x17x49xf32> to vector<3x9x49xf32>
    %c14 = arith.constant 14 : index
    %c0_40 = arith.constant 0 : index
    %c0_41 = arith.constant 0 : index
    %107 = vector.load %arg6[%c14, %c0_40, %c0_41] : memref<27x1x49xf32, #tpu.memory_space<vmem>>, vector<1x1x49xf32>
    %108 = vector.shape_cast %107 : vector<1x1x49xf32> to vector<1x49xf32>
    %109 = vector.shape_cast %108 : vector<1x49xf32> to vector<1x1x49xf32>
    %110 = vector.broadcast %109 : vector<1x1x49xf32> to vector<3x9x49xf32>
    %111 = arith.mulf %106, %110 : vector<3x9x49xf32>
    %112 = arith.addf %105, %111 : vector<3x9x49xf32>
    %113 = vector.extract_strided_slice %6 {offsets = [1, 6, 0], sizes = [3, 9, 49], strides = [1, 1, 1]} : vector<5x17x49xf32> to vector<3x9x49xf32>
    %c15 = arith.constant 15 : index
    %c0_42 = arith.constant 0 : index
    %c0_43 = arith.constant 0 : index
    %114 = vector.load %arg6[%c15, %c0_42, %c0_43] : memref<27x1x49xf32, #tpu.memory_space<vmem>>, vector<1x1x49xf32>
    %115 = vector.shape_cast %114 : vector<1x1x49xf32> to vector<1x49xf32>
    %116 = vector.shape_cast %115 : vector<1x49xf32> to vector<1x1x49xf32>
    %117 = vector.broadcast %116 : vector<1x1x49xf32> to vector<3x9x49xf32>
    %118 = arith.mulf %113, %117 : vector<3x9x49xf32>
    %119 = arith.addf %112, %118 : vector<3x9x49xf32>
    %120 = vector.extract_strided_slice %6 {offsets = [1, 7, 0], sizes = [3, 9, 49], strides = [1, 1, 1]} : vector<5x17x49xf32> to vector<3x9x49xf32>
    %c16 = arith.constant 16 : index
    %c0_44 = arith.constant 0 : index
    %c0_45 = arith.constant 0 : index
    %121 = vector.load %arg6[%c16, %c0_44, %c0_45] : memref<27x1x49xf32, #tpu.memory_space<vmem>>, vector<1x1x49xf32>
    %122 = vector.shape_cast %121 : vector<1x1x49xf32> to vector<1x49xf32>
    %123 = vector.shape_cast %122 : vector<1x49xf32> to vector<1x1x49xf32>
    %124 = vector.broadcast %123 : vector<1x1x49xf32> to vector<3x9x49xf32>
    %125 = arith.mulf %120, %124 : vector<3x9x49xf32>
    %126 = arith.addf %119, %125 : vector<3x9x49xf32>
    %127 = vector.extract_strided_slice %6 {offsets = [1, 8, 0], sizes = [3, 9, 49], strides = [1, 1, 1]} : vector<5x17x49xf32> to vector<3x9x49xf32>
    %c17 = arith.constant 17 : index
    %c0_46 = arith.constant 0 : index
    %c0_47 = arith.constant 0 : index
    %128 = vector.load %arg6[%c17, %c0_46, %c0_47] : memref<27x1x49xf32, #tpu.memory_space<vmem>>, vector<1x1x49xf32>
    %129 = vector.shape_cast %128 : vector<1x1x49xf32> to vector<1x49xf32>
    %130 = vector.shape_cast %129 : vector<1x49xf32> to vector<1x1x49xf32>
    %131 = vector.broadcast %130 : vector<1x1x49xf32> to vector<3x9x49xf32>
    %132 = arith.mulf %127, %131 : vector<3x9x49xf32>
    %133 = arith.addf %126, %132 : vector<3x9x49xf32>
    %134 = vector.extract_strided_slice %6 {offsets = [2, 0, 0], sizes = [3, 9, 49], strides = [1, 1, 1]} : vector<5x17x49xf32> to vector<3x9x49xf32>
    %c18 = arith.constant 18 : index
    %c0_48 = arith.constant 0 : index
    %c0_49 = arith.constant 0 : index
    %135 = vector.load %arg6[%c18, %c0_48, %c0_49] : memref<27x1x49xf32, #tpu.memory_space<vmem>>, vector<1x1x49xf32>
    %136 = vector.shape_cast %135 : vector<1x1x49xf32> to vector<1x49xf32>
    %137 = vector.shape_cast %136 : vector<1x49xf32> to vector<1x1x49xf32>
    %138 = vector.broadcast %137 : vector<1x1x49xf32> to vector<3x9x49xf32>
    %139 = arith.mulf %134, %138 : vector<3x9x49xf32>
    %140 = arith.addf %133, %139 : vector<3x9x49xf32>
    %141 = vector.extract_strided_slice %6 {offsets = [2, 1, 0], sizes = [3, 9, 49], strides = [1, 1, 1]} : vector<5x17x49xf32> to vector<3x9x49xf32>
    %c19 = arith.constant 19 : index
    %c0_50 = arith.constant 0 : index
    %c0_51 = arith.constant 0 : index
    %142 = vector.load %arg6[%c19, %c0_50, %c0_51] : memref<27x1x49xf32, #tpu.memory_space<vmem>>, vector<1x1x49xf32>
    %143 = vector.shape_cast %142 : vector<1x1x49xf32> to vector<1x49xf32>
    %144 = vector.shape_cast %143 : vector<1x49xf32> to vector<1x1x49xf32>
    %145 = vector.broadcast %144 : vector<1x1x49xf32> to vector<3x9x49xf32>
    %146 = arith.mulf %141, %145 : vector<3x9x49xf32>
    %147 = arith.addf %140, %146 : vector<3x9x49xf32>
    %148 = vector.extract_strided_slice %6 {offsets = [2, 2, 0], sizes = [3, 9, 49], strides = [1, 1, 1]} : vector<5x17x49xf32> to vector<3x9x49xf32>
    %c20 = arith.constant 20 : index
    %c0_52 = arith.constant 0 : index
    %c0_53 = arith.constant 0 : index
    %149 = vector.load %arg6[%c20, %c0_52, %c0_53] : memref<27x1x49xf32, #tpu.memory_space<vmem>>, vector<1x1x49xf32>
    %150 = vector.shape_cast %149 : vector<1x1x49xf32> to vector<1x49xf32>
    %151 = vector.shape_cast %150 : vector<1x49xf32> to vector<1x1x49xf32>
    %152 = vector.broadcast %151 : vector<1x1x49xf32> to vector<3x9x49xf32>
    %153 = arith.mulf %148, %152 : vector<3x9x49xf32>
    %154 = arith.addf %147, %153 : vector<3x9x49xf32>
    %155 = vector.extract_strided_slice %6 {offsets = [2, 3, 0], sizes = [3, 9, 49], strides = [1, 1, 1]} : vector<5x17x49xf32> to vector<3x9x49xf32>
    %c21 = arith.constant 21 : index
    %c0_54 = arith.constant 0 : index
    %c0_55 = arith.constant 0 : index
    %156 = vector.load %arg6[%c21, %c0_54, %c0_55] : memref<27x1x49xf32, #tpu.memory_space<vmem>>, vector<1x1x49xf32>
    %157 = vector.shape_cast %156 : vector<1x1x49xf32> to vector<1x49xf32>
    %158 = vector.shape_cast %157 : vector<1x49xf32> to vector<1x1x49xf32>
    %159 = vector.broadcast %158 : vector<1x1x49xf32> to vector<3x9x49xf32>
    %160 = arith.mulf %155, %159 : vector<3x9x49xf32>
    %161 = arith.addf %154, %160 : vector<3x9x49xf32>
    %162 = vector.extract_strided_slice %6 {offsets = [2, 4, 0], sizes = [3, 9, 49], strides = [1, 1, 1]} : vector<5x17x49xf32> to vector<3x9x49xf32>
    %c22 = arith.constant 22 : index
    %c0_56 = arith.constant 0 : index
    %c0_57 = arith.constant 0 : index
    %163 = vector.load %arg6[%c22, %c0_56, %c0_57] : memref<27x1x49xf32, #tpu.memory_space<vmem>>, vector<1x1x49xf32>
    %164 = vector.shape_cast %163 : vector<1x1x49xf32> to vector<1x49xf32>
    %165 = vector.shape_cast %164 : vector<1x49xf32> to vector<1x1x49xf32>
    %166 = vector.broadcast %165 : vector<1x1x49xf32> to vector<3x9x49xf32>
    %167 = arith.mulf %162, %166 : vector<3x9x49xf32>
    %168 = arith.addf %161, %167 : vector<3x9x49xf32>
    %169 = vector.extract_strided_slice %6 {offsets = [2, 5, 0], sizes = [3, 9, 49], strides = [1, 1, 1]} : vector<5x17x49xf32> to vector<3x9x49xf32>
    %c23 = arith.constant 23 : index
    %c0_58 = arith.constant 0 : index
    %c0_59 = arith.constant 0 : index
    %170 = vector.load %arg6[%c23, %c0_58, %c0_59] : memref<27x1x49xf32, #tpu.memory_space<vmem>>, vector<1x1x49xf32>
    %171 = vector.shape_cast %170 : vector<1x1x49xf32> to vector<1x49xf32>
    %172 = vector.shape_cast %171 : vector<1x49xf32> to vector<1x1x49xf32>
    %173 = vector.broadcast %172 : vector<1x1x49xf32> to vector<3x9x49xf32>
    %174 = arith.mulf %169, %173 : vector<3x9x49xf32>
    %175 = arith.addf %168, %174 : vector<3x9x49xf32>
    %176 = vector.extract_strided_slice %6 {offsets = [2, 6, 0], sizes = [3, 9, 49], strides = [1, 1, 1]} : vector<5x17x49xf32> to vector<3x9x49xf32>
    %c24 = arith.constant 24 : index
    %c0_60 = arith.constant 0 : index
    %c0_61 = arith.constant 0 : index
    %177 = vector.load %arg6[%c24, %c0_60, %c0_61] : memref<27x1x49xf32, #tpu.memory_space<vmem>>, vector<1x1x49xf32>
    %178 = vector.shape_cast %177 : vector<1x1x49xf32> to vector<1x49xf32>
    %179 = vector.shape_cast %178 : vector<1x49xf32> to vector<1x1x49xf32>
    %180 = vector.broadcast %179 : vector<1x1x49xf32> to vector<3x9x49xf32>
    %181 = arith.mulf %176, %180 : vector<3x9x49xf32>
    %182 = arith.addf %175, %181 : vector<3x9x49xf32>
    %183 = vector.extract_strided_slice %6 {offsets = [2, 7, 0], sizes = [3, 9, 49], strides = [1, 1, 1]} : vector<5x17x49xf32> to vector<3x9x49xf32>
    %c25 = arith.constant 25 : index
    %c0_62 = arith.constant 0 : index
    %c0_63 = arith.constant 0 : index
    %184 = vector.load %arg6[%c25, %c0_62, %c0_63] : memref<27x1x49xf32, #tpu.memory_space<vmem>>, vector<1x1x49xf32>
    %185 = vector.shape_cast %184 : vector<1x1x49xf32> to vector<1x49xf32>
    %186 = vector.shape_cast %185 : vector<1x49xf32> to vector<1x1x49xf32>
    %187 = vector.broadcast %186 : vector<1x1x49xf32> to vector<3x9x49xf32>
    %188 = arith.mulf %183, %187 : vector<3x9x49xf32>
    %189 = arith.addf %182, %188 : vector<3x9x49xf32>
    %190 = vector.extract_strided_slice %6 {offsets = [2, 8, 0], sizes = [3, 9, 49], strides = [1, 1, 1]} : vector<5x17x49xf32> to vector<3x9x49xf32>
    %c26 = arith.constant 26 : index
    %c0_64 = arith.constant 0 : index
    %c0_65 = arith.constant 0 : index
    %191 = vector.load %arg6[%c26, %c0_64, %c0_65] : memref<27x1x49xf32, #tpu.memory_space<vmem>>, vector<1x1x49xf32>
    %192 = vector.shape_cast %191 : vector<1x1x49xf32> to vector<1x49xf32>
    %193 = vector.shape_cast %192 : vector<1x49xf32> to vector<1x1x49xf32>
    %194 = vector.broadcast %193 : vector<1x1x49xf32> to vector<3x9x49xf32>
    %195 = arith.mulf %190, %194 : vector<3x9x49xf32>
    %196 = arith.addf %189, %195 : vector<3x9x49xf32>
    %c0_66 = arith.constant 0 : index
    %c0_67 = arith.constant 0 : index
    %197 = vector.load %arg7[%c0_66, %c0_67] : memref<49x8xf32, #tpu.memory_space<vmem>>, vector<49x8xf32>
    %c0_68 = arith.constant 0 : index
    %c0_69 = arith.constant 0 : index
    %198 = vector.load %arg8[%c0_68, %c0_69] : memref<1x8xf32, #tpu.memory_space<vmem>>, vector<1x8xf32>
    %199 = vector.extract_strided_slice %196 {offsets = [0, 0, 0], sizes = [1, 9, 49], strides = [1, 1, 1]} : vector<3x9x49xf32> to vector<1x9x49xf32>
    %200 = vector.shape_cast %199 : vector<1x9x49xf32> to vector<9x49xf32>
    %cst_70 = arith.constant dense<0.000000e+00> : vector<9x8xf32>
    %201 = tpu.matmul %200, %197, %cst_70 {dimension_numbers = #tpu.dot_dimension_numbers<[1], [0], [0], [1], [0, 0, 1, 1], [], []>} : vector<9x49xf32>, vector<49x8xf32>, vector<9x8xf32> -> vector<9x8xf32>
    %202 = vector.broadcast %198 : vector<1x8xf32> to vector<9x8xf32>
    %203 = arith.addf %201, %202 : vector<9x8xf32>
    %cst_71 = arith.constant 0.000000e+00 : f32
    %204 = vector.broadcast %cst_71 : f32 to vector<9x8xf32>
    %205 = arith.maximumf %203, %204 : vector<9x8xf32>
    %c0_72 = arith.constant 0 : index
    %c0_73 = arith.constant 0 : index
    %c0_74 = arith.constant 0 : index
    %206 = vector.load %arg5[%c0_72, %c0_73, %c0_74] : memref<3x9x1xf32, #tpu.memory_space<vmem>>, vector<1x9x1xf32>
    %207 = vector.shape_cast %206 : vector<1x9x1xf32> to vector<9x1xf32>
    %208 = vector.broadcast %207 : vector<9x1xf32> to vector<9x8xf32>
    %209 = arith.mulf %205, %208 : vector<9x8xf32>
    %c0_75 = arith.constant 0 : index
    %c0_76 = arith.constant 0 : index
    %c0_77 = arith.constant 0 : index
    %c0_78 = arith.constant 0 : index
    %210 = vector.load %arg9[%c0_75, %c0_76, %c0_77, %c0_78] : memref<1x3x9x8xf32, #tpu.memory_space<vmem>>, vector<1x1x9x8xf32>
    %211 = vector.shape_cast %210 : vector<1x1x9x8xf32> to vector<9x8xf32>
    %212 = vector.shape_cast %209 : vector<9x8xf32> to vector<1x1x9x8xf32>
    tpu.vector_store %arg9[%c0_75, %c0_76, %c0_77, %c0_78], %212 {strides = array<i32>} : memref<1x3x9x8xf32, #tpu.memory_space<vmem>>, vector<1x1x9x8xf32>,
    %213 = vector.extract_strided_slice %196 {offsets = [1, 0, 0], sizes = [1, 9, 49], strides = [1, 1, 1]} : vector<3x9x49xf32> to vector<1x9x49xf32>
    %214 = vector.shape_cast %213 : vector<1x9x49xf32> to vector<9x49xf32>
    %cst_79 = arith.constant dense<0.000000e+00> : vector<9x8xf32>
    %215 = tpu.matmul %214, %197, %cst_79 {dimension_numbers = #tpu.dot_dimension_numbers<[1], [0], [0], [1], [0, 0, 1, 1], [], []>} : vector<9x49xf32>, vector<49x8xf32>, vector<9x8xf32> -> vector<9x8xf32>
    %216 = vector.broadcast %198 : vector<1x8xf32> to vector<9x8xf32>
    %217 = arith.addf %215, %216 : vector<9x8xf32>
    %cst_80 = arith.constant 0.000000e+00 : f32
    %218 = vector.broadcast %cst_80 : f32 to vector<9x8xf32>
    %219 = arith.maximumf %217, %218 : vector<9x8xf32>
    %c1_81 = arith.constant 1 : index
    %c0_82 = arith.constant 0 : index
    %c0_83 = arith.constant 0 : index
    %220 = vector.load %arg5[%c1_81, %c0_82, %c0_83] : memref<3x9x1xf32, #tpu.memory_space<vmem>>, vector<1x9x1xf32>
    %221 = vector.shape_cast %220 : vector<1x9x1xf32> to vector<9x1xf32>
    %222 = vector.broadcast %221 : vector<9x1xf32> to vector<9x8xf32>
    %223 = arith.mulf %219, %222 : vector<9x8xf32>
    %c0_84 = arith.constant 0 : index
    %c1_85 = arith.constant 1 : index
    %c0_86 = arith.constant 0 : index
    %c0_87 = arith.constant 0 : index
    %224 = vector.load %arg9[%c0_84, %c1_85, %c0_86, %c0_87] : memref<1x3x9x8xf32, #tpu.memory_space<vmem>>, vector<1x1x9x8xf32>
    %225 = vector.shape_cast %224 : vector<1x1x9x8xf32> to vector<9x8xf32>
    %226 = vector.shape_cast %223 : vector<9x8xf32> to vector<1x1x9x8xf32>
    tpu.vector_store %arg9[%c0_84, %c1_85, %c0_86, %c0_87], %226 {strides = array<i32>} : memref<1x3x9x8xf32, #tpu.memory_space<vmem>>, vector<1x1x9x8xf32>,
    %227 = vector.extract_strided_slice %196 {offsets = [2, 0, 0], sizes = [1, 9, 49], strides = [1, 1, 1]} : vector<3x9x49xf32> to vector<1x9x49xf32>
    %228 = vector.shape_cast %227 : vector<1x9x49xf32> to vector<9x49xf32>
    %cst_88 = arith.constant dense<0.000000e+00> : vector<9x8xf32>
    %229 = tpu.matmul %228, %197, %cst_88 {dimension_numbers = #tpu.dot_dimension_numbers<[1], [0], [0], [1], [0, 0, 1, 1], [], []>} : vector<9x49xf32>, vector<49x8xf32>, vector<9x8xf32> -> vector<9x8xf32>
    %230 = vector.broadcast %198 : vector<1x8xf32> to vector<9x8xf32>
    %231 = arith.addf %229, %230 : vector<9x8xf32>
    %cst_89 = arith.constant 0.000000e+00 : f32
    %232 = vector.broadcast %cst_89 : f32 to vector<9x8xf32>
    %233 = arith.maximumf %231, %232 : vector<9x8xf32>
    %c2_90 = arith.constant 2 : index
    %c0_91 = arith.constant 0 : index
    %c0_92 = arith.constant 0 : index
    %234 = vector.load %arg5[%c2_90, %c0_91, %c0_92] : memref<3x9x1xf32, #tpu.memory_space<vmem>>, vector<1x9x1xf32>
    %235 = vector.shape_cast %234 : vector<1x9x1xf32> to vector<9x1xf32>
    %236 = vector.broadcast %235 : vector<9x1xf32> to vector<9x8xf32>
    %237 = arith.mulf %233, %236 : vector<9x8xf32>
    %c0_93 = arith.constant 0 : index
    %c2_94 = arith.constant 2 : index
    %c0_95 = arith.constant 0 : index
    %c0_96 = arith.constant 0 : index
    %238 = vector.load %arg9[%c0_93, %c2_94, %c0_95, %c0_96] : memref<1x3x9x8xf32, #tpu.memory_space<vmem>>, vector<1x1x9x8xf32>
    %239 = vector.shape_cast %238 : vector<1x1x9x8xf32> to vector<9x8xf32>
    %240 = vector.shape_cast %237 : vector<9x8xf32> to vector<1x1x9x8xf32>
    tpu.vector_store %arg9[%c0_93, %c2_94, %c0_95, %c0_96], %240 {strides = array<i32>} : memref<1x3x9x8xf32, #tpu.memory_space<vmem>>, vector<1x1x9x8xf32>,
    return
  }
  func.func @transform_0(%arg0: i32, %arg1: i32) -> (i32, i32, i32, i32) {
    %c0_i32 = arith.constant 0 : i32
    %c0_i32_0 = arith.constant 0 : i32
    %c0_i32_1 = arith.constant 0 : i32
    return %arg0, %arg1, %c0_i32, %c0_i32_0 : i32, i32, i32, i32
  }
  func.func @transform_1(%arg0: i32, %arg1: i32) -> (i32, i32, i32, i32) {
    %c3_i32 = arith.constant 3 : i32
    %0 = arith.muli %arg1, %c3_i32 : i32
    %c1_i32 = arith.constant 1 : i32
    %1 = arith.subi %0, %c1_i32 : i32
    %c0_i32 = arith.constant 0 : i32
    %2 = arith.maxsi %1, %c0_i32 : i32
    %c0_i32_0 = arith.constant 0 : i32
    %c0_i32_1 = arith.constant 0 : i32
    %c0_i32_2 = arith.constant 0 : i32
    return %arg0, %2, %c0_i32_0, %c0_i32_1 : i32, i32, i32, i32
  }
  func.func @transform_2(%arg0: i32, %arg1: i32) -> (i32, i32, i32, i32) {
    %c3_i32 = arith.constant 3 : i32
    %0 = arith.muli %arg1, %c3_i32 : i32
    %c3_i32_0 = arith.constant 3 : i32
    %1 = arith.addi %0, %c3_i32_0 : i32
    %c2_i32 = arith.constant 2 : i32
    %2 = arith.minsi %1, %c2_i32 : i32
    %c0_i32 = arith.constant 0 : i32
    %c0_i32_1 = arith.constant 0 : i32
    %c0_i32_2 = arith.constant 0 : i32
    return %arg0, %2, %c0_i32, %c0_i32_1 : i32, i32, i32, i32
  }
  func.func @transform_3(%arg0: i32, %arg1: i32) -> (i32, i32, i32) {
    %c0_i32 = arith.constant 0 : i32
    %c0_i32_0 = arith.constant 0 : i32
    %c0_i32_1 = arith.constant 0 : i32
    return %arg1, %c0_i32, %c0_i32_0 : i32, i32, i32
  }
  func.func @transform_4(%arg0: i32, %arg1: i32) -> (i32, i32, i32) {
    %c0_i32 = arith.constant 0 : i32
    %c0_i32_0 = arith.constant 0 : i32
    %c0_i32_1 = arith.constant 0 : i32
    %c0_i32_2 = arith.constant 0 : i32
    return %c0_i32, %c0_i32_0, %c0_i32_1 : i32, i32, i32
  }
  func.func @transform_5(%arg0: i32, %arg1: i32) -> (i32, i32) {
    %c0_i32 = arith.constant 0 : i32
    %c0_i32_0 = arith.constant 0 : i32
    %c0_i32_1 = arith.constant 0 : i32
    return %c0_i32, %c0_i32_0 : i32, i32
  }
  func.func @transform_6(%arg0: i32, %arg1: i32) -> (i32, i32) {
    %c0_i32 = arith.constant 0 : i32
    %c0_i32_0 = arith.constant 0 : i32
    %c0_i32_1 = arith.constant 0 : i32
    return %c0_i32, %c0_i32_0 : i32, i32
  }
  func.func @transform_7(%arg0: i32, %arg1: i32) -> (i32, i32, i32, i32) {
    %c0_i32 = arith.constant 0 : i32
    %c0_i32_0 = arith.constant 0 : i32
    %c0_i32_1 = arith.constant 0 : i32
    return %arg0, %arg1, %c0_i32, %c0_i32_0 : i32, i32, i32, i32
  }
}

module attributes {stable_mosaic.version = 11 : i64} {
  func.func @_fused_pointwise_residual_kernel(%arg0: i32, %arg1: i32, %arg2: memref<1x3x17x49xf32, #tpu.memory_space<vmem>>, %arg3: memref<49x17xf32, #tpu.memory_space<vmem>>, %arg4: memref<1x17xf32, #tpu.memory_space<vmem>>, %arg5: memref<1x3x17x17xf32, #tpu.memory_space<vmem>>) attributes {dimension_semantics = [#tpu.dimension_semantics<parallel>, #tpu.dimension_semantics<parallel>], iteration_bounds = array<i64: 2, 1>, scalar_prefetch = 0 : i64, scratch_operands = 0 : i64, tpu.core_type = #tpu.core_type<tc>, window_params = [{transform_indices = @transform_0, window_bounds = array<i64: 1, 3, 17, 49>}, {pipeline_mode = #tpu.pipeline_mode<synchronous>, transform_indices = @transform_1, window_bounds = array<i64: 49, 17>}, {pipeline_mode = #tpu.pipeline_mode<synchronous>, transform_indices = @transform_2, window_bounds = array<i64: 1, 17>}, {transform_indices = @transform_3, window_bounds = array<i64: 1, 3, 17, 17>}]} {
    %c0 = arith.constant 0 : index
    %c0_0 = arith.constant 0 : index
    %0 = vector.load %arg3[%c0, %c0_0] : memref<49x17xf32, #tpu.memory_space<vmem>>, vector<49x17xf32>
    %c0_1 = arith.constant 0 : index
    %c0_2 = arith.constant 0 : index
    %1 = vector.load %arg4[%c0_1, %c0_2] : memref<1x17xf32, #tpu.memory_space<vmem>>, vector<1x17xf32>
    %c0_3 = arith.constant 0 : index
    %c0_4 = arith.constant 0 : index
    %c0_5 = arith.constant 0 : index
    %c0_6 = arith.constant 0 : index
    %2 = vector.load %arg2[%c0_3, %c0_4, %c0_5, %c0_6] : memref<1x3x17x49xf32, #tpu.memory_space<vmem>>, vector<1x1x17x49xf32>
    %3 = vector.shape_cast %2 : vector<1x1x17x49xf32> to vector<17x49xf32>
    %cst = arith.constant dense<0.000000e+00> : vector<17x17xf32>
    %4 = tpu.matmul %3, %0, %cst {dimension_numbers = #tpu.dot_dimension_numbers<[1], [0], [0], [1], [0, 0, 1, 1], [], []>} : vector<17x49xf32>, vector<49x17xf32>, vector<17x17xf32> -> vector<17x17xf32>
    %5 = vector.broadcast %1 : vector<1x17xf32> to vector<17x17xf32>
    %6 = arith.addf %4, %5 : vector<17x17xf32>
    %cst_7 = arith.constant 0.000000e+00 : f32
    %7 = vector.broadcast %cst_7 : f32 to vector<17x17xf32>
    %8 = arith.maximumf %6, %7 : vector<17x17xf32>
    %9 = vector.extract_strided_slice %3 {offsets = [0, 0], sizes = [17, 17], strides = [1, 1]} : vector<17x49xf32> to vector<17x17xf32>
    %10 = arith.addf %8, %9 : vector<17x17xf32>
    %c0_8 = arith.constant 0 : index
    %c0_9 = arith.constant 0 : index
    %c0_10 = arith.constant 0 : index
    %c0_11 = arith.constant 0 : index
    %11 = vector.load %arg5[%c0_8, %c0_9, %c0_10, %c0_11] : memref<1x3x17x17xf32, #tpu.memory_space<vmem>>, vector<1x1x17x17xf32>
    %12 = vector.shape_cast %11 : vector<1x1x17x17xf32> to vector<17x17xf32>
    %13 = vector.shape_cast %10 : vector<17x17xf32> to vector<1x1x17x17xf32>
    tpu.vector_store %arg5[%c0_8, %c0_9, %c0_10, %c0_11], %13 {strides = array<i32>} : memref<1x3x17x17xf32, #tpu.memory_space<vmem>>, vector<1x1x17x17xf32>,
    %c0_12 = arith.constant 0 : index
    %c1 = arith.constant 1 : index
    %c0_13 = arith.constant 0 : index
    %c0_14 = arith.constant 0 : index
    %14 = vector.load %arg2[%c0_12, %c1, %c0_13, %c0_14] : memref<1x3x17x49xf32, #tpu.memory_space<vmem>>, vector<1x1x17x49xf32>
    %15 = vector.shape_cast %14 : vector<1x1x17x49xf32> to vector<17x49xf32>
    %cst_15 = arith.constant dense<0.000000e+00> : vector<17x17xf32>
    %16 = tpu.matmul %15, %0, %cst_15 {dimension_numbers = #tpu.dot_dimension_numbers<[1], [0], [0], [1], [0, 0, 1, 1], [], []>} : vector<17x49xf32>, vector<49x17xf32>, vector<17x17xf32> -> vector<17x17xf32>
    %17 = vector.broadcast %1 : vector<1x17xf32> to vector<17x17xf32>
    %18 = arith.addf %16, %17 : vector<17x17xf32>
    %cst_16 = arith.constant 0.000000e+00 : f32
    %19 = vector.broadcast %cst_16 : f32 to vector<17x17xf32>
    %20 = arith.maximumf %18, %19 : vector<17x17xf32>
    %21 = vector.extract_strided_slice %15 {offsets = [0, 0], sizes = [17, 17], strides = [1, 1]} : vector<17x49xf32> to vector<17x17xf32>
    %22 = arith.addf %20, %21 : vector<17x17xf32>
    %c0_17 = arith.constant 0 : index
    %c1_18 = arith.constant 1 : index
    %c0_19 = arith.constant 0 : index
    %c0_20 = arith.constant 0 : index
    %23 = vector.load %arg5[%c0_17, %c1_18, %c0_19, %c0_20] : memref<1x3x17x17xf32, #tpu.memory_space<vmem>>, vector<1x1x17x17xf32>
    %24 = vector.shape_cast %23 : vector<1x1x17x17xf32> to vector<17x17xf32>
    %25 = vector.shape_cast %22 : vector<17x17xf32> to vector<1x1x17x17xf32>
    tpu.vector_store %arg5[%c0_17, %c1_18, %c0_19, %c0_20], %25 {strides = array<i32>} : memref<1x3x17x17xf32, #tpu.memory_space<vmem>>, vector<1x1x17x17xf32>,
    %c0_21 = arith.constant 0 : index
    %c2 = arith.constant 2 : index
    %c0_22 = arith.constant 0 : index
    %c0_23 = arith.constant 0 : index
    %26 = vector.load %arg2[%c0_21, %c2, %c0_22, %c0_23] : memref<1x3x17x49xf32, #tpu.memory_space<vmem>>, vector<1x1x17x49xf32>
    %27 = vector.shape_cast %26 : vector<1x1x17x49xf32> to vector<17x49xf32>
    %cst_24 = arith.constant dense<0.000000e+00> : vector<17x17xf32>
    %28 = tpu.matmul %27, %0, %cst_24 {dimension_numbers = #tpu.dot_dimension_numbers<[1], [0], [0], [1], [0, 0, 1, 1], [], []>} : vector<17x49xf32>, vector<49x17xf32>, vector<17x17xf32> -> vector<17x17xf32>
    %29 = vector.broadcast %1 : vector<1x17xf32> to vector<17x17xf32>
    %30 = arith.addf %28, %29 : vector<17x17xf32>
    %cst_25 = arith.constant 0.000000e+00 : f32
    %31 = vector.broadcast %cst_25 : f32 to vector<17x17xf32>
    %32 = arith.maximumf %30, %31 : vector<17x17xf32>
    %33 = vector.extract_strided_slice %27 {offsets = [0, 0], sizes = [17, 17], strides = [1, 1]} : vector<17x49xf32> to vector<17x17xf32>
    %34 = arith.addf %32, %33 : vector<17x17xf32>
    %c0_26 = arith.constant 0 : index
    %c2_27 = arith.constant 2 : index
    %c0_28 = arith.constant 0 : index
    %c0_29 = arith.constant 0 : index
    %35 = vector.load %arg5[%c0_26, %c2_27, %c0_28, %c0_29] : memref<1x3x17x17xf32, #tpu.memory_space<vmem>>, vector<1x1x17x17xf32>
    %36 = vector.shape_cast %35 : vector<1x1x17x17xf32> to vector<17x17xf32>
    %37 = vector.shape_cast %34 : vector<17x17xf32> to vector<1x1x17x17xf32>
    tpu.vector_store %arg5[%c0_26, %c2_27, %c0_28, %c0_29], %37 {strides = array<i32>} : memref<1x3x17x17xf32, #tpu.memory_space<vmem>>, vector<1x1x17x17xf32>,
    return
  }
  func.func @transform_0(%arg0: i32, %arg1: i32) -> (i32, i32, i32, i32) {
    %c0_i32 = arith.constant 0 : i32
    %c0_i32_0 = arith.constant 0 : i32
    %c0_i32_1 = arith.constant 0 : i32
    return %arg0, %arg1, %c0_i32, %c0_i32_0 : i32, i32, i32, i32
  }
  func.func @transform_1(%arg0: i32, %arg1: i32) -> (i32, i32) {
    %c0_i32 = arith.constant 0 : i32
    %c0_i32_0 = arith.constant 0 : i32
    %c0_i32_1 = arith.constant 0 : i32
    return %c0_i32, %c0_i32_0 : i32, i32
  }
  func.func @transform_2(%arg0: i32, %arg1: i32) -> (i32, i32) {
    %c0_i32 = arith.constant 0 : i32
    %c0_i32_0 = arith.constant 0 : i32
    %c0_i32_1 = arith.constant 0 : i32
    return %c0_i32, %c0_i32_0 : i32, i32
  }
  func.func @transform_3(%arg0: i32, %arg1: i32) -> (i32, i32, i32, i32) {
    %c0_i32 = arith.constant 0 : i32
    %c0_i32_0 = arith.constant 0 : i32
    %c0_i32_1 = arith.constant 0 : i32
    return %arg0, %arg1, %c0_i32, %c0_i32_0 : i32, i32, i32, i32
  }
}

</mosaic_0001>

<llo_original>
// kernel: drdb_sequential_forward.5
$region0: #{drdb_sequential_forward.5}
  #allocation0 [shape = 'u32[]', space=smem, size = 0x4, offset = 0x4, fixed_abs, tag = 'smem constant byte address 0x4 - core index']
  #allocation1 [shape = 'u32[144,128]{1,0:T(1,128)}', space=vmem, size = 0x12000, scoped, tag = 'internal scratch']
  %s0 = inlined_call_operand.vmem [shape: f32[2,3,17,49], index: 0, kind: input, shape index: {}, may-alias: {0,1,2}]
  %s1 = inlined_call_operand.vmem [shape: f32[2,3,17,49], index: 1, kind: input, shape index: {}, may-alias: {0,1,2}]
  %s2 = inlined_call_operand.vmem [shape: f32[2,3,17,49], index: 2, kind: input, shape index: {}, may-alias: {0,1,2}]
  %s3 = inlined_call_operand.vmem [shape: f32[3,9,1], index: 3, kind: input, shape index: {}]
  %s4 = inlined_call_operand.vmem [shape: f32[27,1,49], index: 4, kind: input, shape index: {}]
  %s5 = inlined_call_operand.vmem [shape: f32[49,8], index: 5, kind: input, shape index: {}]
  %s6 = inlined_call_operand.vmem [shape: f32[1,8], index: 6, kind: input, shape index: {}]
  %s7 = inlined_call_operand.vmem [shape: f32[2,3,9,8], index: 7, kind: output, shape index: {}]
  %s8 = sld [smem:[#allocation0]]
  $region61: #{drdb_sequential_forward.5} parent=0
    _
  %s10 = ssub.s32 1, %s8
  %s11 = scalar_select 0, %s10, %s8
  loop: start=0, step=1, limit=4
  $region2: #{drdb_sequential_forward.5} parent=0 // loop_pre_header
    _
  $region3: #{drdb_sequential_forward.5} parent=0 // loop_header
    %s13 = sphi 0, %s17
    %p14 = scmp.ge.s32.totalorder %s13, 4
    %s20 = sphi 0, %s32
    %s21 = sphi 0, %s28
    %s22 = sphi 0, %s20
    %s23 = sphi 0, %s21
    %s24 = sphi 0, %s22
    %s25 = sphi 0, %s23
    %s37 = sphi 0, %s39
    %s40 = sphi 0, %s37
    %s41 = sphi 0, %s40
    %s57 = sphi 0, %s41
    %s73 = sphi 0, %s75
    %s76 = sphi 0, %s73
    %s77 = sphi 0, %s76
    %s93 = sphi 0, %s77
    %s109 = sphi 0, %s111
    %s112 = sphi 0, %s109
    %s113 = sphi 0, %s112
    %s129 = sphi 0, %s113
    %s135 = sphi 0, %s137
    %s138 = sphi 0, %s135
    %s139 = sphi 0, %s138
    %s155 = sphi 0, %s139
    %s159 = sphi 0, %s159
    %s161 = sphi 0, %s159
    %s162 = sphi 0, %s161
    %s176 = sphi 0, %s162
    %s180 = sphi 0, %s180
    %s182 = sphi 0, %s180
    %s183 = sphi 0, %s182
    %s197 = sphi 0, %s183
    %s201 = sphi 0, %s201
    %s203 = sphi 0, %s201
    %s204 = sphi 0, %s203
    %s218 = sphi 0, %s204
    %s226 = sphi 0, %s228
    %s229 = sphi 0, %s226
    %s230 = sphi 0, %s229
    %s246 = sphi 0, %s230
  $region4: #{drdb_sequential_forward.5} parent=0 // loop_header_branch
    %16 = sbr.rel (%p14) target = $region8
  $region5: #{drdb_sequential_forward.5} parent=0 // loop_body
    %s18 = ssub.s32 %s13, 1
    %s19 = ssub.s32 %s13, 2
    %s26 = sadd.s32 1, %s21
    %p27 = scmp.ge.s32.totalorder %s26, 1
    %s28 = scalar_select %p27, 0, %s26
    %s29 = sadd.s32 1, %s20
    %s30 = scalar_select %p27, %s29, %s20
    %p31 = scmp.ge.s32.totalorder %s30, 2
    %s32 = scalar_select %p31, 0, %s30
    %s33 = ssub.s32 %s20, %s32
    %s34 = ssub.s32 %s21, %s28
    %s35 = sor.u32 %s33, %s34
    %p36 = scmp.eq.s32.totalorder %s35, 0
    %s38 = sadd.s32 %s37, 1
    %s39 = scalar_select %p36, %s37, %s38
    %p42 = pneg %p36
    %p43 = scmp.eq.s32.totalorder %s13, 1
    %p44 = por %p42, %p43
    %p45 = scmp.ne.s32.totalorder %s37, %s40
    %p46 = scmp.eq.s32.totalorder %s13, 0
    %p47 = por %p45, %p46
    %p48 = scmp.ne.s32.totalorder %s37, %s40
    %p49 = scmp.eq.s32.totalorder %s18, 1
    %p50 = por %p48, %p49
    %p51 = scmp.ne.s32.totalorder %s40, %s41
    %p52 = scmp.eq.s32.totalorder %s18, 0
    %p53 = por %p51, %p52
    %p54 = scmp.ne.s32.totalorder %s40, %s41
    %p55 = scmp.eq.s32.totalorder %s19, 1
    %p56 = por %p54, %p55
    %p58 = scmp.ne.s32.totalorder %s41, %s57
    %p59 = scmp.eq.s32.totalorder %s19, 0
    %p60 = por %p58, %p59
    %s61 = smul.u32 %s21, 3
    %s62 = ssub.s32 %s61, 1
    %p63 = scmp.gt.s32.totalorder %s62, 0
    %s64 = scalar_select %p63, %s62, 0
    %s65 = smul.u32 %s28, 3
    %s66 = ssub.s32 %s65, 1
    %p67 = scmp.gt.s32.totalorder %s66, 0
    %s68 = scalar_select %p67, %s66, 0
    %s69 = ssub.s32 %s20, %s32
    %s70 = ssub.s32 %s64, %s68
    %s71 = sor.u32 %s69, %s70
    %p72 = scmp.eq.s32.totalorder %s71, 0
    %s74 = sadd.s32 %s73, 1
    %s75 = scalar_select %p72, %s73, %s74
    %p78 = pneg %p72
    %p79 = scmp.eq.s32.totalorder %s13, 1
    %p80 = por %p78, %p79
    %p81 = scmp.ne.s32.totalorder %s73, %s76
    %p82 = scmp.eq.s32.totalorder %s13, 0
    %p83 = por %p81, %p82
    %p84 = scmp.ne.s32.totalorder %s73, %s76
    %p85 = scmp.eq.s32.totalorder %s18, 1
    %p86 = por %p84, %p85
    %p87 = scmp.ne.s32.totalorder %s76, %s77
    %p88 = scmp.eq.s32.totalorder %s18, 0
    %p89 = por %p87, %p88
    %p90 = scmp.ne.s32.totalorder %s76, %s77
    %p91 = scmp.eq.s32.totalorder %s19, 1
    %p92 = por %p90, %p91
    %p94 = scmp.ne.s32.totalorder %s77, %s93
    %p95 = scmp.eq.s32.totalorder %s19, 0
    %p96 = por %p94, %p95
    %s97 = smul.u32 %s21, 3
    %s98 = sadd.s32 %s97, 3
    %p99 = scmp.lt.s32.totalorder %s98, 2
    %s100 = scalar_select %p99, %s98, 2
    %s101 = smul.u32 %s28, 3
    %s102 = sadd.s32 %s101, 3
    %p103 = scmp.lt.s32.totalorder %s102, 2
    %s104 = scalar_select %p103, %s102, 2
    %s105 = ssub.s32 %s20, %s32
    %s106 = ssub.s32 %s100, %s104
    %s107 = sor.u32 %s105, %s106
    %p108 = scmp.eq.s32.totalorder %s107, 0
    %s110 = sadd.s32 %s109, 1
    %s111 = scalar_select %p108, %s109, %s110
    %p114 = pneg %p108
    %p115 = scmp.eq.s32.totalorder %s13, 1
    %p116 = por %p114, %p115
    %p117 = scmp.ne.s32.totalorder %s109, %s112
    %p118 = scmp.eq.s32.totalorder %s13, 0
    %p119 = por %p117, %p118
    %p120 = scmp.ne.s32.totalorder %s109, %s112
    %p121 = scmp.eq.s32.totalorder %s18, 1
    %p122 = por %p120, %p121
    %p123 = scmp.ne.s32.totalorder %s112, %s113
    %p124 = scmp.eq.s32.totalorder %s18, 0
    %p125 = por %p123, %p124
    %p126 = scmp.ne.s32.totalorder %s112, %s113
    %p127 = scmp.eq.s32.totalorder %s19, 1
    %p128 = por %p126, %p127
    %p130 = scmp.ne.s32.totalorder %s113, %s129
    %p131 = scmp.eq.s32.totalorder %s19, 0
    %p132 = por %p130, %p131
    %s133 = ssub.s32 %s21, %s28
    %p134 = scmp.eq.s32.totalorder %s133, 0
    %s136 = sadd.s32 %s135, 1
    %s137 = scalar_select %p134, %s135, %s136
    %p140 = pneg %p134
    %p141 = scmp.eq.s32.totalorder %s13, 1
    %p142 = por %p140, %p141
    %p143 = scmp.ne.s32.totalorder %s135, %s138
    %p144 = scmp.eq.s32.totalorder %s13, 0
    %p145 = por %p143, %p144
    %p146 = scmp.ne.s32.totalorder %s135, %s138
    %p147 = scmp.eq.s32.totalorder %s18, 1
    %p148 = por %p146, %p147
    %p149 = scmp.ne.s32.totalorder %s138, %s139
    %p150 = scmp.eq.s32.totalorder %s18, 0
    %p151 = por %p149, %p150
    %p152 = scmp.ne.s32.totalorder %s138, %s139
    %p153 = scmp.eq.s32.totalorder %s19, 1
    %p154 = por %p152, %p153
    %p156 = scmp.ne.s32.totalorder %s139, %s155
    %p157 = scmp.eq.s32.totalorder %s19, 0
    %p158 = por %p156, %p157
    %s160 = sadd.s32 %s159, 1
    %p163 = scmp.eq.s32.totalorder %s13, 1
    %p164 = scmp.ne.s32.totalorder %s159, %s161
    %p165 = scmp.eq.s32.totalorder %s13, 0
    %p166 = por %p164, %p165
    %p167 = scmp.ne.s32.totalorder %s159, %s161
    %p168 = scmp.eq.s32.totalorder %s18, 1
    %p169 = por %p167, %p168
    %p170 = scmp.ne.s32.totalorder %s161, %s162
    %p171 = scmp.eq.s32.totalorder %s18, 0
    %p172 = por %p170, %p171
    %p173 = scmp.ne.s32.totalorder %s161, %s162
    %p174 = scmp.eq.s32.totalorder %s19, 1
    %p175 = por %p173, %p174
    %p177 = scmp.ne.s32.totalorder %s162, %s176
    %p178 = scmp.eq.s32.totalorder %s19, 0
    %p179 = por %p177, %p178
    %s181 = sadd.s32 %s180, 1
    %p184 = scmp.eq.s32.totalorder %s13, 1
    %p185 = scmp.ne.s32.totalorder %s180, %s182
    %p186 = scmp.eq.s32.totalorder %s13, 0
    %p187 = por %p185, %p186
    %p188 = scmp.ne.s32.totalorder %s180, %s182
    %p189 = scmp.eq.s32.totalorder %s18, 1
    %p190 = por %p188, %p189
    %p191 = scmp.ne.s32.totalorder %s182, %s183
    %p192 = scmp.eq.s32.totalorder %s18, 0
    %p193 = por %p191, %p192
    %p194 = scmp.ne.s32.totalorder %s182, %s183
    %p195 = scmp.eq.s32.totalorder %s19, 1
    %p196 = por %p194, %p195
    %p198 = scmp.ne.s32.totalorder %s183, %s197
    %p199 = scmp.eq.s32.totalorder %s19, 0
    %p200 = por %p198, %p199
    %s202 = sadd.s32 %s201, 1
    %p205 = scmp.eq.s32.totalorder %s13, 1
    %p206 = scmp.ne.s32.totalorder %s201, %s203
    %p207 = scmp.eq.s32.totalorder %s13, 0
    %p208 = por %p206, %p207
    %p209 = scmp.ne.s32.totalorder %s201, %s203
    %p210 = scmp.eq.s32.totalorder %s18, 1
    %p211 = por %p209, %p210
    %p212 = scmp.ne.s32.totalorder %s203, %s204
    %p213 = scmp.eq.s32.totalorder %s18, 0
    %p214 = por %p212, %p213
    %p215 = scmp.ne.s32.totalorder %s203, %s204
    %p216 = scmp.eq.s32.totalorder %s19, 1
    %p217 = por %p215, %p216
    %p219 = scmp.ne.s32.totalorder %s204, %s218
    %p220 = scmp.eq.s32.totalorder %s19, 0
    %p221 = por %p219, %p220
    %s222 = ssub.s32 %s20, %s32
    %s223 = ssub.s32 %s21, %s28
    %s224 = sor.u32 %s222, %s223
    %p225 = scmp.eq.s32.totalorder %s224, 0
    %s227 = sadd.s32 %s226, 1
    %s228 = scalar_select %p225, %s226, %s227
    %p231 = pneg %p225
    %p232 = scmp.eq.s32.totalorder %s13, 1
    %p233 = por %p231, %p232
    %p234 = scmp.ne.s32.totalorder %s226, %s229
    %p235 = scmp.eq.s32.totalorder %s13, 0
    %p236 = por %p234, %p235
    %p237 = scmp.ne.s32.totalorder %s226, %s229
    %p238 = scmp.eq.s32.totalorder %s18, 1
    %p239 = por %p237, %p238
    %p240 = scmp.ne.s32.totalorder %s229, %s230
    %p241 = scmp.eq.s32.totalorder %s18, 0
    %p242 = por %p240, %p241
    %p243 = scmp.ne.s32.totalorder %s229, %s230
    %p244 = scmp.eq.s32.totalorder %s19, 1
    %p245 = por %p243, %p244
    %p247 = scmp.ne.s32.totalorder %s230, %s246
    %p248 = scmp.eq.s32.totalorder %s19, 0
    %p249 = por %p247, %p248
    %p250 = scmp.le.s32.totalorder 1, %s13
    %p251 = scmp.lt.s32.totalorder %s13, 3
    %p252 = pnand %p250, %p251
    %p253 = pneg %p252
    // Predicated region
    $region9: #{drdb_sequential_forward.5} parent=5 // pred_check
      _
    $region10: #{drdb_sequential_forward.5} parent=5 // pred_check_branch
      %255 = sbr.rel (%p252) target = $region12
    $region11: #{drdb_sequential_forward.5} parent=5 // pred_region
      %s256 = ssub.s32 %s13, 1
      // Predicated region
      $region13: #{drdb_sequential_forward.5} parent=11 // pred_check
        %p257 = pneg %p151
      $region14: #{drdb_sequential_forward.5} parent=11 // pred_check_branch
        %259 = sbr.rel (%p257) target = $region16
      $region15: #{drdb_sequential_forward.5} parent=11 // pred_region
        %s260 = smul.u32 3, %s23
        %p261 = scmp.lt.s32.totalorder %s260, 2
        %s262 = scalar_select %p261, %s260, 2
        %s263 = smul.addr %s262, 2
        %s264 = smul.addr %s263, 8
        %s265 = scalar_lea.vmem %s3, %s264
        %s266 = smul.u32 3, %s23
      $region16: #{drdb_sequential_forward.5} parent=11 // pred_fallthru
        _
      // Predicated region
      $region17: #{drdb_sequential_forward.5} parent=11 // pred_check
        %p267 = pneg %p172
      $region18: #{drdb_sequential_forward.5} parent=11 // pred_check_branch
        %269 = sbr.rel (%p267) target = $region20
      $region19: #{drdb_sequential_forward.5} parent=11 // pred_region
        _
      $region20: #{drdb_sequential_forward.5} parent=11 // pred_fallthru
        _
      // Predicated region
      $region21: #{drdb_sequential_forward.5} parent=11 // pred_check
        %p270 = pneg %p193
      $region22: #{drdb_sequential_forward.5} parent=11 // pred_check_branch
        %272 = sbr.rel (%p270) target = $region24
      $region23: #{drdb_sequential_forward.5} parent=11 // pred_region
        _
      $region24: #{drdb_sequential_forward.5} parent=11 // pred_fallthru
        _
      // Predicated region
      $region25: #{drdb_sequential_forward.5} parent=11 // pred_check
        %p273 = pneg %p214
      $region26: #{drdb_sequential_forward.5} parent=11 // pred_check_branch
        %275 = sbr.rel (%p273) target = $region28
      $region27: #{drdb_sequential_forward.5} parent=11 // pred_region
        _
      $region28: #{drdb_sequential_forward.5} parent=11 // pred_fallthru
        _
    $region12: #{drdb_sequential_forward.5} parent=5 // pred_fallthru
      _
    %p276 = scmp.lt.s32.totalorder %s13, 2
    // Predicated region
    $region29: #{drdb_sequential_forward.5} parent=5 // pred_check
      %p277 = pneg %p276
    $region30: #{drdb_sequential_forward.5} parent=5 // pred_check_branch
      %279 = sbr.rel (%p277) target = $region32
    $region31: #{drdb_sequential_forward.5} parent=5 // pred_region
      // Predicated region
      $region33: #{drdb_sequential_forward.5} parent=31 // pred_check
        %p280 = pneg %p47
      $region34: #{drdb_sequential_forward.5} parent=31 // pred_check_branch
        %282 = sbr.rel (%p280) target = $region36
      $region35: #{drdb_sequential_forward.5} parent=31 // pred_region
        %s283 = smul.u32 3, %s21
        %p284 = scmp.lt.s32.totalorder %s20, 1
        %s285 = scalar_select %p284, %s20, 1
        %p286 = scmp.lt.s32.totalorder %s283, 2
        %s287 = scalar_select %p286, %s283, 2
        %s288 = smul.addr %s287, 3
        %s289 = smul.addr %s285, 9
        %s290 = sadd.s32 %s288, %s289
        %s291 = smul.addr %s290, 8
        %s292 = scalar_lea.vmem %s0, %s291
        %s293 = smul.u32 3, %s21
      $region36: #{drdb_sequential_forward.5} parent=31 // pred_fallthru
        _
      // Predicated region
      $region37: #{drdb_sequential_forward.5} parent=31 // pred_check
        %p294 = pneg %p83
      $region38: #{drdb_sequential_forward.5} parent=31 // pred_check_branch
        %296 = sbr.rel (%p294) target = $region40
      $region39: #{drdb_sequential_forward.5} parent=31 // pred_region
        %s297 = smul.u32 %s21, 3
        %s298 = ssub.s32 %s297, 1
        %p299 = scmp.gt.s32.totalorder %s298, 0
        %s300 = scalar_select %p299, %s298, 0
        %p301 = scmp.lt.s32.totalorder %s20, 1
        %s302 = scalar_select %p301, %s20, 1
        %p303 = scmp.lt.s32.totalorder %s300, 2
        %s304 = scalar_select %p303, %s300, 2
        %s305 = smul.addr %s304, 3
        %s306 = smul.addr %s302, 9
        %s307 = sadd.s32 %s305, %s306
        %s308 = smul.addr %s307, 8
        %s309 = scalar_lea.vmem %s1, %s308
        %s310 = smul.u32 %s21, 3
        %s311 = ssub.s32 %s310, 1
        %p312 = scmp.gt.s32.totalorder %s311, 0
        %s313 = scalar_select %p312, %s311, 0
      $region40: #{drdb_sequential_forward.5} parent=31 // pred_fallthru
        _
      // Predicated region
      $region41: #{drdb_sequential_forward.5} parent=31 // pred_check
        %p314 = pneg %p119
      $region42: #{drdb_sequential_forward.5} parent=31 // pred_check_branch
        %316 = sbr.rel (%p314) target = $region44
      $region43: #{drdb_sequential_forward.5} parent=31 // pred_region
        %s317 = smul.u32 %s21, 3
        %s318 = sadd.s32 %s317, 3
        %p319 = scmp.lt.s32.totalorder %s318, 2
        %s320 = scalar_select %p319, %s318, 2
        %p321 = scmp.lt.s32.totalorder %s20, 1
        %s322 = scalar_select %p321, %s20, 1
        %p323 = scmp.lt.s32.totalorder %s320, 2
        %s324 = scalar_select %p323, %s320, 2
        %s325 = smul.addr %s324, 3
        %s326 = smul.addr %s322, 9
        %s327 = sadd.s32 %s325, %s326
        %s328 = smul.addr %s327, 8
        %s329 = scalar_lea.vmem %s2, %s328
        %s330 = smul.u32 %s21, 3
        %s331 = sadd.s32 %s330, 3
        %p332 = scmp.lt.s32.totalorder %s331, 2
        %s333 = scalar_select %p332, %s331, 2
      $region44: #{drdb_sequential_forward.5} parent=31 // pred_fallthru
        _
    $region32: #{drdb_sequential_forward.5} parent=5 // pred_fallthru
      _
    %p334 = scmp.le.s32.totalorder 1, %s13
    %p335 = scmp.lt.s32.totalorder %s13, 3
    %p336 = pnand %p334, %p335
    %p337 = pneg %p336
    // Predicated region
    $region45: #{drdb_sequential_forward.5} parent=5 // pred_check
      _
    $region46: #{drdb_sequential_forward.5} parent=5 // pred_check_branch
      %339 = sbr.rel (%p336) target = $region48
    $region47: #{drdb_sequential_forward.5} parent=5 // pred_region
      %s340 = ssub.s32 %s13, 1
      %s341 = smul.u32 3, %s23
      %p342 = scmp.lt.s32.totalorder %s22, 1
      %s343 = scalar_select %p342, %s22, 1
      %p344 = scmp.lt.s32.totalorder %s341, 2
      %s345 = scalar_select %p344, %s341, 2
      %s346 = smul.addr %s345, 3
      %s347 = smul.addr %s343, 9
      %s348 = sadd.s32 %s346, %s347
      %s349 = smul.addr %s348, 8
      %s350 = scalar_lea.vmem %s0, %s349
      %p351 = pneg %p53
      %p352 = pneg %p50
      %s353 = smul.u32 %s23, 3
      %s354 = ssub.s32 %s353, 1
      %p355 = scmp.gt.s32.totalorder %s354, 0
      %s356 = scalar_select %p355, %s354, 0
      %p357 = scmp.lt.s32.totalorder %s22, 1
      %s358 = scalar_select %p357, %s22, 1
      %p359 = scmp.lt.s32.totalorder %s356, 2
      %s360 = scalar_select %p359, %s356, 2
      %s361 = smul.addr %s360, 3
      %s362 = smul.addr %s358, 9
      %s363 = sadd.s32 %s361, %s362
      %s364 = smul.addr %s363, 8
      %s365 = scalar_lea.vmem %s1, %s364
      %p366 = pneg %p89
      %p367 = pneg %p86
      %s368 = smul.u32 %s23, 3
      %s369 = sadd.s32 %s368, 3
      %p370 = scmp.lt.s32.totalorder %s369, 2
      %s371 = scalar_select %p370, %s369, 2
      %p372 = scmp.lt.s32.totalorder %s22, 1
      %s373 = scalar_select %p372, %s22, 1
      %p374 = scmp.lt.s32.totalorder %s371, 2
      %s375 = scalar_select %p374, %s371, 2
      %s376 = smul.addr %s375, 3
      %s377 = smul.addr %s373, 9
      %s378 = sadd.s32 %s376, %s377
      %s379 = smul.addr %s378, 8
      %s380 = scalar_lea.vmem %s2, %s379
      %p381 = pneg %p125
      %p382 = pneg %p122
      %s383 = smul.u32 3, %s23
      %p384 = scmp.lt.s32.totalorder %s383, 2
      %s385 = scalar_select %p384, %s383, 2
      %s386 = smul.addr %s385, 2
      %s387 = smul.addr %s386, 8
      %s388 = scalar_lea.vmem %s3, %s387
      %p389 = pneg %p151
      %p390 = pneg %p148
      %p391 = pneg %p172
      %p392 = pneg %p169
      %p393 = pneg %p193
      %p394 = pneg %p190
      %p395 = pneg %p214
      %p396 = pneg %p211
      %p397 = pneg %p242
      %p398 = pneg %p239
      %s399 = smul.u32 3, %s23
      %p400 = scmp.lt.s32.totalorder %s22, 1
      %s401 = scalar_select %p400, %s22, 1
      %p402 = scmp.lt.s32.totalorder %s399, 2
      %s403 = scalar_select %p402, %s399, 2
      %s404 = smul.addr %s403, 2
      %s405 = smul.addr %s401, 6
      %s406 = sadd.s32 %s404, %s405
      %s407 = smul.addr %s406, 8
      %s408 = scalar_lea.vmem %s7, %s407
      %s409 = smul.u32 3, %s23
      %p410 = scmp.lt.s32.totalorder %s22, 1
      %s411 = scalar_select %p410, %s22, 1
      %p412 = scmp.lt.s32.totalorder %s409, 2
      %s413 = scalar_select %p412, %s409, 2
      %s414 = smul.addr %s413, 3
      %s415 = smul.addr %s411, 9
      %s416 = sadd.s32 %s414, %s415
      %s417 = smul.addr %s416, 8
      %s418 = scalar_lea.vmem %s0, %s417
      %s419 = smul.u32 3, %s23
      %s420 = smul.u32 %s23, 3
      %s421 = ssub.s32 %s420, 1
      %p422 = scmp.gt.s32.totalorder %s421, 0
      %s423 = scalar_select %p422, %s421, 0
      %p424 = scmp.lt.s32.totalorder %s22, 1
      %s425 = scalar_select %p424, %s22, 1
      %p426 = scmp.lt.s32.totalorder %s423, 2
      %s427 = scalar_select %p426, %s423, 2
      %s428 = smul.addr %s427, 3
      %s429 = smul.addr %s425, 9
      %s430 = sadd.s32 %s428, %s429
      %s431 = smul.addr %s430, 8
      %s432 = scalar_lea.vmem %s1, %s431
      %s433 = smul.u32 %s23, 3
      %s434 = ssub.s32 %s433, 1
      %p435 = scmp.gt.s32.totalorder %s434, 0
      %s436 = scalar_select %p435, %s434, 0
      %s437 = smul.u32 %s23, 3
      %s438 = sadd.s32 %s437, 3
      %p439 = scmp.lt.s32.totalorder %s438, 2
      %s440 = scalar_select %p439, %s438, 2
      %p441 = scmp.lt.s32.totalorder %s22, 1
      %s442 = scalar_select %p441, %s22, 1
      %p443 = scmp.lt.s32.totalorder %s440, 2
      %s444 = scalar_select %p443, %s440, 2
      %s445 = smul.addr %s444, 3
      %s446 = smul.addr %s442, 9
      %s447 = sadd.s32 %s445, %s446
      %s448 = smul.addr %s447, 8
      %s449 = scalar_lea.vmem %s2, %s448
      %s450 = smul.u32 %s23, 3
      %s451 = sadd.s32 %s450, 3
      %p452 = scmp.lt.s32.totalorder %s451, 2
      %s453 = scalar_select %p452, %s451, 2
      %s454 = smul.u32 3, %s23
      %p455 = scmp.lt.s32.totalorder %s454, 2
      %s456 = scalar_select %p455, %s454, 2
      %s457 = smul.addr %s456, 2
      %s458 = smul.addr %s457, 8
      %s459 = scalar_lea.vmem %s3, %s458
      %s460 = smul.u32 3, %s23
      %s461 = smul.u32 3, %s23
      %p462 = scmp.lt.s32.totalorder %s22, 1
      %s463 = scalar_select %p462, %s22, 1
      %p464 = scmp.lt.s32.totalorder %s461, 2
      %s465 = scalar_select %p464, %s461, 2
      %s466 = smul.addr %s465, 2
      %s467 = smul.addr %s463, 6
      %s468 = sadd.s32 %s466, %s467
      %s469 = smul.addr %s468, 8
      %s470 = scalar_lea.vmem %s7, %s469
      %s471 = smul.u32 3, %s23
      %v472 = vld [vmem:[%s432] sm:$0xff]
      %v473 = vld [vmem:[%s432 + $0x8] sm:$0xff]
      %v474 = vld [vmem:[%s432 + $0x10] sm:$0x1]
      %v475 = vld [vmem:[%s418] sm:$0xff]
      %v476 = vld [vmem:[%s418 + $0x8] sm:$0xff]
      %v477 = vld [vmem:[%s418 + $0x10] sm:$0x1]
      %v478 = vld [vmem:[%s418 + $0x18] sm:$0xff]
      %v479 = vld [vmem:[%s418 + $0x20] sm:$0xff]
      %v480 = vld [vmem:[%s418 + $0x28] sm:$0x1]
      %v481 = vld [vmem:[%s418 + $0x30] sm:$0xff]
      %v482 = vld [vmem:[%s418 + $0x38] sm:$0xff]
      %v483 = vld [vmem:[%s418 + $0x40] sm:$0x1]
      %v484 = vld [vmem:[%s449] sm:$0xff]
      %v485 = vld [vmem:[%s449 + $0x8] sm:$0xff]
      %v486 = vld [vmem:[%s449 + $0x10] sm:$0x1]
      %v487 = vld [vmem:[%s4] sm:$0x1]
      %v489 = vlaneseq
      %v490 = vshrl.u32 %v489, 7
      %v491 = vsub.s32 0, %v490
      %v492 = vrot.slane %v487, %v491
      %v494 = vmul.f32 %v472, %v492
      %v495 = vmul.f32 %v473, %v492
      %v496 = vmul.f32 %v475, %v492
      %v497 = vmul.f32 %v476, %v492
      %v498 = vmul.f32 %v478, %v492
      %v499 = vmul.f32 %v479, %v492
      %v500 = vadd.f32 %v494, 0.0
      %v501 = vadd.f32 %v495, 0.0
      %v502 = vadd.f32 %v496, 0.0
      %v503 = vadd.f32 %v497, 0.0
      %v504 = vadd.f32 %v498, 0.0
      %v505 = vadd.f32 %v499, 0.0
      %s506 = scalar_lea.vmem %s4, 1
      %v507 = vld [vmem:[%s506] sm:$0x1]
      %v509 = vlaneseq
      %v510 = vshrl.u32 %v509, 7
      %v511 = vsub.s32 0, %v510
      %v512 = vrot.slane %v507, %v511
      %v514 = vmul.f32 %v472, %v512
      %v515 = vmul.f32 %v473, %v512
      %v516 = vmul.f32 %v475, %v512
      %v517 = vmul.f32 %v476, %v512
      %v518 = vmul.f32 %v478, %v512
      %v519 = vmul.f32 %v479, %v512
      %vm526 = vcmask 1046528
      %v527 = vrot.slane %v514, 1
      %v528 = vrot.slane %v515, 1
      %v529 = vsel %vm526, %v527, %v528
      %v530 = vrot.slane %v516, 1
      %v531 = vrot.slane %v517, 1
      %v532 = vsel %vm526, %v530, %v531
      %v533 = vrot.slane %v518, 1
      %v534 = vrot.slane %v519, 1
      %v535 = vsel %vm526, %v533, %v534
      %v542 = vadd.f32 %v500, %v529
      %v543 = vadd.f32 %v501, %v528
      %v544 = vadd.f32 %v502, %v532
      %v545 = vadd.f32 %v503, %v531
      %v546 = vadd.f32 %v504, %v535
      %v547 = vadd.f32 %v505, %v534
      %s548 = scalar_lea.vmem %s4, 2
      %v549 = vld [vmem:[%s548] sm:$0x1]
      %v551 = vlaneseq
      %v552 = vshrl.u32 %v551, 7
      %v553 = vsub.s32 0, %v552
      %v554 = vrot.slane %v549, %v553
      %v556 = vmul.f32 %v472, %v554
      %v557 = vmul.f32 %v473, %v554
      %v558 = vmul.f32 %v475, %v554
      %v559 = vmul.f32 %v476, %v554
      %v560 = vmul.f32 %v478, %v554
      %v561 = vmul.f32 %v479, %v554
      %vm568 = vcmask 1045504
      %v569 = vrot.slane %v556, 2
      %v570 = vrot.slane %v557, 2
      %v571 = vsel %vm568, %v569, %v570
      %v572 = vrot.slane %v558, 2
      %v573 = vrot.slane %v559, 2
      %v574 = vsel %vm568, %v572, %v573
      %v575 = vrot.slane %v560, 2
      %v576 = vrot.slane %v561, 2
      %v577 = vsel %vm568, %v575, %v576
      %v584 = vadd.f32 %v542, %v571
      %v585 = vadd.f32 %v543, %v570
      %v586 = vadd.f32 %v544, %v574
      %v587 = vadd.f32 %v545, %v573
      %v588 = vadd.f32 %v546, %v577
      %v589 = vadd.f32 %v547, %v576
      %s590 = scalar_lea.vmem %s4, 3
      %v591 = vld [vmem:[%s590] sm:$0x1]
      %v593 = vlaneseq
      %v594 = vshrl.u32 %v593, 7
      %v595 = vsub.s32 0, %v594
      %v596 = vrot.slane %v591, %v595
      %v598 = vmul.f32 %v472, %v596
      %v599 = vmul.f32 %v473, %v596
      %v600 = vmul.f32 %v475, %v596
      %v601 = vmul.f32 %v476, %v596
      %v602 = vmul.f32 %v478, %v596
      %v603 = vmul.f32 %v479, %v596
      %vm610 = vcmask 1044480
      %v611 = vrot.slane %v598, 3
      %v612 = vrot.slane %v599, 3
      %v613 = vsel %vm610, %v611, %v612
      %v614 = vrot.slane %v600, 3
      %v615 = vrot.slane %v601, 3
      %v616 = vsel %vm610, %v614, %v615
      %v617 = vrot.slane %v602, 3
      %v618 = vrot.slane %v603, 3
      %v619 = vsel %vm610, %v617, %v618
      %v626 = vadd.f32 %v584, %v613
      %v627 = vadd.f32 %v585, %v612
      %v628 = vadd.f32 %v586, %v616
      %v629 = vadd.f32 %v587, %v615
      %v630 = vadd.f32 %v588, %v619
      %v631 = vadd.f32 %v589, %v618
      %s632 = scalar_lea.vmem %s4, 4
      %v633 = vld [vmem:[%s632] sm:$0x1]
      %v635 = vlaneseq
      %v636 = vshrl.u32 %v635, 7
      %v637 = vsub.s32 0, %v636
      %v638 = vrot.slane %v633, %v637
      %v640 = vmul.f32 %v472, %v638
      %v641 = vmul.f32 %v473, %v638
      %v642 = vmul.f32 %v475, %v638
      %v643 = vmul.f32 %v476, %v638
      %v644 = vmul.f32 %v478, %v638
      %v645 = vmul.f32 %v479, %v638
      %vm652 = vcmask 1043456
      %v653 = vrot.slane %v640, 4
      %v654 = vrot.slane %v641, 4
      %v655 = vsel %vm652, %v653, %v654
      %v656 = vrot.slane %v642, 4
      %v657 = vrot.slane %v643, 4
      %v658 = vsel %vm652, %v656, %v657
      %v659 = vrot.slane %v644, 4
      %v660 = vrot.slane %v645, 4
      %v661 = vsel %vm652, %v659, %v660
      %v668 = vadd.f32 %v626, %v655
      %v669 = vadd.f32 %v627, %v654
      %v670 = vadd.f32 %v628, %v658
      %v671 = vadd.f32 %v629, %v657
      %v672 = vadd.f32 %v630, %v661
      %v673 = vadd.f32 %v631, %v660
      %s674 = scalar_lea.vmem %s4, 5
      %v675 = vld [vmem:[%s674] sm:$0x1]
      %v677 = vlaneseq
      %v678 = vshrl.u32 %v677, 7
      %v679 = vsub.s32 0, %v678
      %v680 = vrot.slane %v675, %v679
      %v682 = vmul.f32 %v472, %v680
      %v683 = vmul.f32 %v473, %v680
      %v684 = vmul.f32 %v475, %v680
      %v685 = vmul.f32 %v476, %v680
      %v686 = vmul.f32 %v478, %v680
      %v687 = vmul.f32 %v479, %v680
      %vm694 = vcmask 1042432
      %v695 = vrot.slane %v682, 5
      %v696 = vrot.slane %v683, 5
      %v697 = vsel %vm694, %v695, %v696
      %v698 = vrot.slane %v684, 5
      %v699 = vrot.slane %v685, 5
      %v700 = vsel %vm694, %v698, %v699
      %v701 = vrot.slane %v686, 5
      %v702 = vrot.slane %v687, 5
      %v703 = vsel %vm694, %v701, %v702
      %v710 = vadd.f32 %v668, %v697
      %v711 = vadd.f32 %v669, %v696
      %v712 = vadd.f32 %v670, %v700
      %v713 = vadd.f32 %v671, %v699
      %v714 = vadd.f32 %v672, %v703
      %v715 = vadd.f32 %v673, %v702
      %s716 = scalar_lea.vmem %s4, 6
      %v717 = vld [vmem:[%s716] sm:$0x1]
      %v719 = vlaneseq
      %v720 = vshrl.u32 %v719, 7
      %v721 = vsub.s32 0, %v720
      %v722 = vrot.slane %v717, %v721
      %v724 = vmul.f32 %v472, %v722
      %v725 = vmul.f32 %v473, %v722
      %v726 = vmul.f32 %v475, %v722
      %v727 = vmul.f32 %v476, %v722
      %v728 = vmul.f32 %v478, %v722
      %v729 = vmul.f32 %v479, %v722
      %vm736 = vcmask 1041408
      %v737 = vrot.slane %v724, 6
      %v738 = vrot.slane %v725, 6
      %v739 = vsel %vm736, %v737, %v738
      %v740 = vrot.slane %v726, 6
      %v741 = vrot.slane %v727, 6
      %v742 = vsel %vm736, %v740, %v741
      %v743 = vrot.slane %v728, 6
      %v744 = vrot.slane %v729, 6
      %v745 = vsel %vm736, %v743, %v744
      %v752 = vadd.f32 %v710, %v739
      %v753 = vadd.f32 %v711, %v738
      %v754 = vadd.f32 %v712, %v742
      %v755 = vadd.f32 %v713, %v741
      %v756 = vadd.f32 %v714, %v745
      %v757 = vadd.f32 %v715, %v744
      %s758 = scalar_lea.vmem %s4, 7
      %v759 = vld [vmem:[%s758] sm:$0x1]
      %v761 = vlaneseq
      %v762 = vshrl.u32 %v761, 7
      %v763 = vsub.s32 0, %v762
      %v764 = vrot.slane %v759, %v763
      %v766 = vmul.f32 %v472, %v764
      %v767 = vmul.f32 %v473, %v764
      %v768 = vmul.f32 %v475, %v764
      %v769 = vmul.f32 %v476, %v764
      %v770 = vmul.f32 %v478, %v764
      %v771 = vmul.f32 %v479, %v764
      %vm778 = vcmask 1040384
      %v779 = vrot.slane %v766, 7
      %v780 = vrot.slane %v767, 7
      %v781 = vsel %vm778, %v779, %v780
      %v782 = vrot.slane %v768, 7
      %v783 = vrot.slane %v769, 7
      %v784 = vsel %vm778, %v782, %v783
      %v785 = vrot.slane %v770, 7
      %v786 = vrot.slane %v771, 7
      %v787 = vsel %vm778, %v785, %v786
      %v794 = vadd.f32 %v752, %v781
      %v795 = vadd.f32 %v753, %v780
      %v796 = vadd.f32 %v754, %v784
      %v797 = vadd.f32 %v755, %v783
      %v798 = vadd.f32 %v756, %v787
      %v799 = vadd.f32 %v757, %v786
      %s800 = scalar_lea.vmem %s4, 8
      %v801 = vld [vmem:[%s800] sm:$0x1]
      %v803 = vlaneseq
      %v804 = vshrl.u32 %v803, 7
      %v805 = vsub.s32 0, %v804
      %v806 = vrot.slane %v801, %v805
      %v808 = vmul.f32 %v473, %v806
      %v809 = vmul.f32 %v474, %v806
      %v810 = vmul.f32 %v476, %v806
      %v811 = vmul.f32 %v477, %v806
      %v812 = vmul.f32 %v479, %v806
      %v813 = vmul.f32 %v480, %v806
      %v814 = vadd.f32 %v794, %v808
      %v815 = vadd.f32 %v795, %v809
      %v816 = vadd.f32 %v796, %v810
      %v817 = vadd.f32 %v797, %v811
      %v818 = vadd.f32 %v798, %v812
      %v819 = vadd.f32 %v799, %v813
      %s820 = scalar_lea.vmem %s4, 9
      %v821 = vld [vmem:[%s820] sm:$0x1]
      %v823 = vlaneseq
      %v824 = vshrl.u32 %v823, 7
      %v825 = vsub.s32 0, %v824
      %v826 = vrot.slane %v821, %v825
      %v828 = vmul.f32 %v475, %v826
      %v829 = vmul.f32 %v476, %v826
      %v830 = vmul.f32 %v478, %v826
      %v831 = vmul.f32 %v479, %v826
      %v832 = vmul.f32 %v481, %v826
      %v833 = vmul.f32 %v482, %v826
      %v834 = vadd.f32 %v814, %v828
      %v835 = vadd.f32 %v815, %v829
      %v836 = vadd.f32 %v816, %v830
      %v837 = vadd.f32 %v817, %v831
      %v838 = vadd.f32 %v818, %v832
      %v839 = vadd.f32 %v819, %v833
      %s840 = scalar_lea.vmem %s4, 10
      %v841 = vld [vmem:[%s840] sm:$0x1]
      %v843 = vlaneseq
      %v844 = vshrl.u32 %v843, 7
      %v845 = vsub.s32 0, %v844
      %v846 = vrot.slane %v841, %v845
      %v848 = vmul.f32 %v475, %v846
      %v849 = vmul.f32 %v476, %v846
      %v850 = vmul.f32 %v478, %v846
      %v851 = vmul.f32 %v479, %v846
      %v852 = vmul.f32 %v481, %v846
      %v853 = vmul.f32 %v482, %v846
      %v860 = vrot.slane %v848, 1
      %v861 = vrot.slane %v849, 1
      %v862 = vsel %vm526, %v860, %v861
      %v863 = vrot.slane %v850, 1
      %v864 = vrot.slane %v851, 1
      %v865 = vsel %vm526, %v863, %v864
      %v866 = vrot.slane %v852, 1
      %v867 = vrot.slane %v853, 1
      %v868 = vsel %vm526, %v866, %v867
      %v875 = vadd.f32 %v834, %v862
      %v876 = vadd.f32 %v835, %v861
      %v877 = vadd.f32 %v836, %v865
      %v878 = vadd.f32 %v837, %v864
      %v879 = vadd.f32 %v838, %v868
      %v880 = vadd.f32 %v839, %v867
      %s881 = scalar_lea.vmem %s4, 11
      %v882 = vld [vmem:[%s881] sm:$0x1]
      %v884 = vlaneseq
      %v885 = vshrl.u32 %v884, 7
      %v886 = vsub.s32 0, %v885
      %v887 = vrot.slane %v882, %v886
      %v889 = vmul.f32 %v475, %v887
      %v890 = vmul.f32 %v476, %v887
      %v891 = vmul.f32 %v478, %v887
      %v892 = vmul.f32 %v479, %v887
      %v893 = vmul.f32 %v481, %v887
      %v894 = vmul.f32 %v482, %v887
      %v901 = vrot.slane %v889, 2
      %v902 = vrot.slane %v890, 2
      %v903 = vsel %vm568, %v901, %v902
      %v904 = vrot.slane %v891, 2
      %v905 = vrot.slane %v892, 2
      %v906 = vsel %vm568, %v904, %v905
      %v907 = vrot.slane %v893, 2
      %v908 = vrot.slane %v894, 2
      %v909 = vsel %vm568, %v907, %v908
      %v916 = vadd.f32 %v875, %v903
      %v917 = vadd.f32 %v876, %v902
      %v918 = vadd.f32 %v877, %v906
      %v919 = vadd.f32 %v878, %v905
      %v920 = vadd.f32 %v879, %v909
      %v921 = vadd.f32 %v880, %v908
      %s922 = scalar_lea.vmem %s4, 12
      %v923 = vld [vmem:[%s922] sm:$0x1]
      %v925 = vlaneseq
      %v926 = vshrl.u32 %v925, 7
      %v927 = vsub.s32 0, %v926
      %v928 = vrot.slane %v923, %v927
      %v930 = vmul.f32 %v475, %v928
      %v931 = vmul.f32 %v476, %v928
      %v932 = vmul.f32 %v478, %v928
      %v933 = vmul.f32 %v479, %v928
      %v934 = vmul.f32 %v481, %v928
      %v935 = vmul.f32 %v482, %v928
      %v942 = vrot.slane %v930, 3
      %v943 = vrot.slane %v931, 3
      %v944 = vsel %vm610, %v942, %v943
      %v945 = vrot.slane %v932, 3
      %v946 = vrot.slane %v933, 3
      %v947 = vsel %vm610, %v945, %v946
      %v948 = vrot.slane %v934, 3
      %v949 = vrot.slane %v935, 3
      %v950 = vsel %vm610, %v948, %v949
      %v957 = vadd.f32 %v916, %v944
      %v958 = vadd.f32 %v917, %v943
      %v959 = vadd.f32 %v918, %v947
      %v960 = vadd.f32 %v919, %v946
      %v961 = vadd.f32 %v920, %v950
      %v962 = vadd.f32 %v921, %v949
      %s963 = scalar_lea.vmem %s4, 13
      %v964 = vld [vmem:[%s963] sm:$0x1]
      %v966 = vlaneseq
      %v967 = vshrl.u32 %v966, 7
      %v968 = vsub.s32 0, %v967
      %v969 = vrot.slane %v964, %v968
      %v971 = vmul.f32 %v475, %v969
      %v972 = vmul.f32 %v476, %v969
      %v973 = vmul.f32 %v478, %v969
      %v974 = vmul.f32 %v479, %v969
      %v975 = vmul.f32 %v481, %v969
      %v976 = vmul.f32 %v482, %v969
      %v983 = vrot.slane %v971, 4
      %v984 = vrot.slane %v972, 4
      %v985 = vsel %vm652, %v983, %v984
      %v986 = vrot.slane %v973, 4
      %v987 = vrot.slane %v974, 4
      %v988 = vsel %vm652, %v986, %v987
      %v989 = vrot.slane %v975, 4
      %v990 = vrot.slane %v976, 4
      %v991 = vsel %vm652, %v989, %v990
      %v998 = vadd.f32 %v957, %v985
      %v999 = vadd.f32 %v958, %v984
      %v1000 = vadd.f32 %v959, %v988
      %v1001 = vadd.f32 %v960, %v987
      %v1002 = vadd.f32 %v961, %v991
      %v1003 = vadd.f32 %v962, %v990
      %s1004 = scalar_lea.vmem %s4, 14
      %v1005 = vld [vmem:[%s1004] sm:$0x1]
      %v1007 = vlaneseq
      %v1008 = vshrl.u32 %v1007, 7
      %v1009 = vsub.s32 0, %v1008
      %v1010 = vrot.slane %v1005, %v1009
      %v1012 = vmul.f32 %v475, %v1010
      %v1013 = vmul.f32 %v476, %v1010
      %v1014 = vmul.f32 %v478, %v1010
      %v1015 = vmul.f32 %v479, %v1010
      %v1016 = vmul.f32 %v481, %v1010
      %v1017 = vmul.f32 %v482, %v1010
      %v1024 = vrot.slane %v1012, 5
      %v1025 = vrot.slane %v1013, 5
      %v1026 = vsel %vm694, %v1024, %v1025
      %v1027 = vrot.slane %v1014, 5
      %v1028 = vrot.slane %v1015, 5
      %v1029 = vsel %vm694, %v1027, %v1028
      %v1030 = vrot.slane %v1016, 5
      %v1031 = vrot.slane %v1017, 5
      %v1032 = vsel %vm694, %v1030, %v1031
      %v1039 = vadd.f32 %v998, %v1026
      %v1040 = vadd.f32 %v999, %v1025
      %v1041 = vadd.f32 %v1000, %v1029
      %v1042 = vadd.f32 %v1001, %v1028
      %v1043 = vadd.f32 %v1002, %v1032
      %v1044 = vadd.f32 %v1003, %v1031
      %s1045 = scalar_lea.vmem %s4, 15
      %v1046 = vld [vmem:[%s1045] sm:$0x1]
      %v1048 = vlaneseq
      %v1049 = vshrl.u32 %v1048, 7
      %v1050 = vsub.s32 0, %v1049
      %v1051 = vrot.slane %v1046, %v1050
      %v1053 = vmul.f32 %v475, %v1051
      %v1054 = vmul.f32 %v476, %v1051
      %v1055 = vmul.f32 %v478, %v1051
      %v1056 = vmul.f32 %v479, %v1051
      %v1057 = vmul.f32 %v481, %v1051
      %v1058 = vmul.f32 %v482, %v1051
      %v1065 = vrot.slane %v1053, 6
      %v1066 = vrot.slane %v1054, 6
      %v1067 = vsel %vm736, %v1065, %v1066
      %v1068 = vrot.slane %v1055, 6
      %v1069 = vrot.slane %v1056, 6
      %v1070 = vsel %vm736, %v1068, %v1069
      %v1071 = vrot.slane %v1057, 6
      %v1072 = vrot.slane %v1058, 6
      %v1073 = vsel %vm736, %v1071, %v1072
      %v1080 = vadd.f32 %v1039, %v1067
      %v1081 = vadd.f32 %v1040, %v1066
      %v1082 = vadd.f32 %v1041, %v1070
      %v1083 = vadd.f32 %v1042, %v1069
      %v1084 = vadd.f32 %v1043, %v1073
      %v1085 = vadd.f32 %v1044, %v1072
      %s1086 = scalar_lea.vmem %s4, 16
      %v1087 = vld [vmem:[%s1086] sm:$0x1]
      %v1089 = vlaneseq
      %v1090 = vshrl.u32 %v1089, 7
      %v1091 = vsub.s32 0, %v1090
      %v1092 = vrot.slane %v1087, %v1091
      %v1094 = vmul.f32 %v475, %v1092
      %v1095 = vmul.f32 %v476, %v1092
      %v1096 = vmul.f32 %v478, %v1092
      %v1097 = vmul.f32 %v479, %v1092
      %v1098 = vmul.f32 %v481, %v1092
      %v1099 = vmul.f32 %v482, %v1092
      %v1106 = vrot.slane %v1094, 7
      %v1107 = vrot.slane %v1095, 7
      %v1108 = vsel %vm778, %v1106, %v1107
      %v1109 = vrot.slane %v1096, 7
      %v1110 = vrot.slane %v1097, 7
      %v1111 = vsel %vm778, %v1109, %v1110
      %v1112 = vrot.slane %v1098, 7
      %v1113 = vrot.slane %v1099, 7
      %v1114 = vsel %vm778, %v1112, %v1113
      %v1121 = vadd.f32 %v1080, %v1108
      %v1122 = vadd.f32 %v1081, %v1107
      %v1123 = vadd.f32 %v1082, %v1111
      %v1124 = vadd.f32 %v1083, %v1110
      %v1125 = vadd.f32 %v1084, %v1114
      %v1126 = vadd.f32 %v1085, %v1113
      %s1127 = scalar_lea.vmem %s4, 17
      %v1128 = vld [vmem:[%s1127] sm:$0x1]
      %v1130 = vlaneseq
      %v1131 = vshrl.u32 %v1130, 7
      %v1132 = vsub.s32 0, %v1131
      %v1133 = vrot.slane %v1128, %v1132
      %v1135 = vmul.f32 %v476, %v1133
      %v1136 = vmul.f32 %v477, %v1133
      %v1137 = vmul.f32 %v479, %v1133
      %v1138 = vmul.f32 %v480, %v1133
      %v1139 = vmul.f32 %v482, %v1133
      %v1140 = vmul.f32 %v483, %v1133
      %v1141 = vadd.f32 %v1121, %v1135
      %v1142 = vadd.f32 %v1122, %v1136
      %v1143 = vadd.f32 %v1123, %v1137
      %v1144 = vadd.f32 %v1124, %v1138
      %v1145 = vadd.f32 %v1125, %v1139
      %v1146 = vadd.f32 %v1126, %v1140
      %s1147 = scalar_lea.vmem %s4, 18
      %v1148 = vld [vmem:[%s1147] sm:$0x1]
      %v1150 = vlaneseq
      %v1151 = vshrl.u32 %v1150, 7
      %v1152 = vsub.s32 0, %v1151
      %v1153 = vrot.slane %v1148, %v1152
      %v1155 = vmul.f32 %v478, %v1153
      %v1156 = vmul.f32 %v479, %v1153
      %v1157 = vmul.f32 %v481, %v1153
      %v1158 = vmul.f32 %v482, %v1153
      %v1159 = vmul.f32 %v484, %v1153
      %v1160 = vmul.f32 %v485, %v1153
      %v1161 = vadd.f32 %v1141, %v1155
      %v1162 = vadd.f32 %v1142, %v1156
      %v1163 = vadd.f32 %v1143, %v1157
      %v1164 = vadd.f32 %v1144, %v1158
      %v1165 = vadd.f32 %v1145, %v1159
      %v1166 = vadd.f32 %v1146, %v1160
      %s1167 = scalar_lea.vmem %s4, 19
      %v1168 = vld [vmem:[%s1167] sm:$0x1]
      %v1170 = vlaneseq
      %v1171 = vshrl.u32 %v1170, 7
      %v1172 = vsub.s32 0, %v1171
      %v1173 = vrot.slane %v1168, %v1172
      %v1175 = vmul.f32 %v478, %v1173
      %v1176 = vmul.f32 %v479, %v1173
      %v1177 = vmul.f32 %v481, %v1173
      %v1178 = vmul.f32 %v482, %v1173
      %v1179 = vmul.f32 %v484, %v1173
      %v1180 = vmul.f32 %v485, %v1173
      %v1187 = vrot.slane %v1175, 1
      %v1188 = vrot.slane %v1176, 1
      %v1189 = vsel %vm526, %v1187, %v1188
      %v1190 = vrot.slane %v1177, 1
      %v1191 = vrot.slane %v1178, 1
      %v1192 = vsel %vm526, %v1190, %v1191
      %v1193 = vrot.slane %v1179, 1
      %v1194 = vrot.slane %v1180, 1
      %v1195 = vsel %vm526, %v1193, %v1194
      %v1202 = vadd.f32 %v1161, %v1189
      %v1203 = vadd.f32 %v1162, %v1188
      %v1204 = vadd.f32 %v1163, %v1192
      %v1205 = vadd.f32 %v1164, %v1191
      %v1206 = vadd.f32 %v1165, %v1195
      %v1207 = vadd.f32 %v1166, %v1194
      %s1208 = scalar_lea.vmem %s4, 20
      %v1209 = vld [vmem:[%s1208] sm:$0x1]
      %v1211 = vlaneseq
      %v1212 = vshrl.u32 %v1211, 7
      %v1213 = vsub.s32 0, %v1212
      %v1214 = vrot.slane %v1209, %v1213
      %v1216 = vmul.f32 %v478, %v1214
      %v1217 = vmul.f32 %v479, %v1214
      %v1218 = vmul.f32 %v481, %v1214
      %v1219 = vmul.f32 %v482, %v1214
      %v1220 = vmul.f32 %v484, %v1214
      %v1221 = vmul.f32 %v485, %v1214
      %v1228 = vrot.slane %v1216, 2
      %v1229 = vrot.slane %v1217, 2
      %v1230 = vsel %vm568, %v1228, %v1229
      %v1231 = vrot.slane %v1218, 2
      %v1232 = vrot.slane %v1219, 2
      %v1233 = vsel %vm568, %v1231, %v1232
      %v1234 = vrot.slane %v1220, 2
      %v1235 = vrot.slane %v1221, 2
      %v1236 = vsel %vm568, %v1234, %v1235
      %v1243 = vadd.f32 %v1202, %v1230
      %v1244 = vadd.f32 %v1203, %v1229
      %v1245 = vadd.f32 %v1204, %v1233
      %v1246 = vadd.f32 %v1205, %v1232
      %v1247 = vadd.f32 %v1206, %v1236
      %v1248 = vadd.f32 %v1207, %v1235
      %s1249 = scalar_lea.vmem %s4, 21
      %v1250 = vld [vmem:[%s1249] sm:$0x1]
      %v1252 = vlaneseq
      %v1253 = vshrl.u32 %v1252, 7
      %v1254 = vsub.s32 0, %v1253
      %v1255 = vrot.slane %v1250, %v1254
      %v1257 = vmul.f32 %v478, %v1255
      %v1258 = vmul.f32 %v479, %v1255
      %v1259 = vmul.f32 %v481, %v1255
      %v1260 = vmul.f32 %v482, %v1255
      %v1261 = vmul.f32 %v484, %v1255
      %v1262 = vmul.f32 %v485, %v1255
      %v1269 = vrot.slane %v1257, 3
      %v1270 = vrot.slane %v1258, 3
      %v1271 = vsel %vm610, %v1269, %v1270
      %v1272 = vrot.slane %v1259, 3
      %v1273 = vrot.slane %v1260, 3
      %v1274 = vsel %vm610, %v1272, %v1273
      %v1275 = vrot.slane %v1261, 3
      %v1276 = vrot.slane %v1262, 3
      %v1277 = vsel %vm610, %v1275, %v1276
      %v1284 = vadd.f32 %v1243, %v1271
      %v1285 = vadd.f32 %v1244, %v1270
      %v1286 = vadd.f32 %v1245, %v1274
      %v1287 = vadd.f32 %v1246, %v1273
      %v1288 = vadd.f32 %v1247, %v1277
      %v1289 = vadd.f32 %v1248, %v1276
      %s1290 = scalar_lea.vmem %s4, 22
      %v1291 = vld [vmem:[%s1290] sm:$0x1]
      %v1293 = vlaneseq
      %v1294 = vshrl.u32 %v1293, 7
      %v1295 = vsub.s32 0, %v1294
      %v1296 = vrot.slane %v1291, %v1295
      %v1298 = vmul.f32 %v478, %v1296
      %v1299 = vmul.f32 %v479, %v1296
      %v1300 = vmul.f32 %v481, %v1296
      %v1301 = vmul.f32 %v482, %v1296
      %v1302 = vmul.f32 %v484, %v1296
      %v1303 = vmul.f32 %v485, %v1296
      %v1310 = vrot.slane %v1298, 4
      %v1311 = vrot.slane %v1299, 4
      %v1312 = vsel %vm652, %v1310, %v1311
      %v1313 = vrot.slane %v1300, 4
      %v1314 = vrot.slane %v1301, 4
      %v1315 = vsel %vm652, %v1313, %v1314
      %v1316 = vrot.slane %v1302, 4
      %v1317 = vrot.slane %v1303, 4
      %v1318 = vsel %vm652, %v1316, %v1317
      %v1325 = vadd.f32 %v1284, %v1312
      %v1326 = vadd.f32 %v1285, %v1311
      %v1327 = vadd.f32 %v1286, %v1315
      %v1328 = vadd.f32 %v1287, %v1314
      %v1329 = vadd.f32 %v1288, %v1318
      %v1330 = vadd.f32 %v1289, %v1317
      %s1331 = scalar_lea.vmem %s4, 23
      %v1332 = vld [vmem:[%s1331] sm:$0x1]
      %v1334 = vlaneseq
      %v1335 = vshrl.u32 %v1334, 7
      %v1336 = vsub.s32 0, %v1335
      %v1337 = vrot.slane %v1332, %v1336
      %v1339 = vmul.f32 %v478, %v1337
      %v1340 = vmul.f32 %v479, %v1337
      %v1341 = vmul.f32 %v481, %v1337
      %v1342 = vmul.f32 %v482, %v1337
      %v1343 = vmul.f32 %v484, %v1337
      %v1344 = vmul.f32 %v485, %v1337
      %v1351 = vrot.slane %v1339, 5
      %v1352 = vrot.slane %v1340, 5
      %v1353 = vsel %vm694, %v1351, %v1352
      %v1354 = vrot.slane %v1341, 5
      %v1355 = vrot.slane %v1342, 5
      %v1356 = vsel %vm694, %v1354, %v1355
      %v1357 = vrot.slane %v1343, 5
      %v1358 = vrot.slane %v1344, 5
      %v1359 = vsel %vm694, %v1357, %v1358
      %v1366 = vadd.f32 %v1325, %v1353
      %v1367 = vadd.f32 %v1326, %v1352
      %v1368 = vadd.f32 %v1327, %v1356
      %v1369 = vadd.f32 %v1328, %v1355
      %v1370 = vadd.f32 %v1329, %v1359
      %v1371 = vadd.f32 %v1330, %v1358
      %s1372 = scalar_lea.vmem %s4, 24
      %v1373 = vld [vmem:[%s1372] sm:$0x1]
      %v1375 = vlaneseq
      %v1376 = vshrl.u32 %v1375, 7
      %v1377 = vsub.s32 0, %v1376
      %v1378 = vrot.slane %v1373, %v1377
      %v1380 = vmul.f32 %v478, %v1378
      %v1381 = vmul.f32 %v479, %v1378
      %v1382 = vmul.f32 %v481, %v1378
      %v1383 = vmul.f32 %v482, %v1378
      %v1384 = vmul.f32 %v484, %v1378
      %v1385 = vmul.f32 %v485, %v1378
      %v1392 = vrot.slane %v1380, 6
      %v1393 = vrot.slane %v1381, 6
      %v1394 = vsel %vm736, %v1392, %v1393
      %v1395 = vrot.slane %v1382, 6
      %v1396 = vrot.slane %v1383, 6
      %v1397 = vsel %vm736, %v1395, %v1396
      %v1398 = vrot.slane %v1384, 6
      %v1399 = vrot.slane %v1385, 6
      %v1400 = vsel %vm736, %v1398, %v1399
      %v1407 = vadd.f32 %v1366, %v1394
      %v1408 = vadd.f32 %v1367, %v1393
      %v1409 = vadd.f32 %v1368, %v1397
      %v1410 = vadd.f32 %v1369, %v1396
      %v1411 = vadd.f32 %v1370, %v1400
      %v1412 = vadd.f32 %v1371, %v1399
      %s1413 = scalar_lea.vmem %s4, 25
      %v1414 = vld [vmem:[%s1413] sm:$0x1]
      %v1416 = vlaneseq
      %v1417 = vshrl.u32 %v1416, 7
      %v1418 = vsub.s32 0, %v1417
      %v1419 = vrot.slane %v1414, %v1418
      %v1421 = vmul.f32 %v478, %v1419
      %v1422 = vmul.f32 %v479, %v1419
      %v1423 = vmul.f32 %v481, %v1419
      %v1424 = vmul.f32 %v482, %v1419
      %v1425 = vmul.f32 %v484, %v1419
      %v1426 = vmul.f32 %v485, %v1419
      %v1433 = vrot.slane %v1421, 7
      %v1434 = vrot.slane %v1422, 7
      %v1435 = vsel %vm778, %v1433, %v1434
      %v1436 = vrot.slane %v1423, 7
      %v1437 = vrot.slane %v1424, 7
      %v1438 = vsel %vm778, %v1436, %v1437
      %v1439 = vrot.slane %v1425, 7
      %v1440 = vrot.slane %v1426, 7
      %v1441 = vsel %vm778, %v1439, %v1440
      %v1448 = vadd.f32 %v1407, %v1435
      %v1449 = vadd.f32 %v1408, %v1434
      %v1450 = vadd.f32 %v1409, %v1438
      %v1451 = vadd.f32 %v1410, %v1437
      %v1452 = vadd.f32 %v1411, %v1441
      %v1453 = vadd.f32 %v1412, %v1440
      %s1454 = scalar_lea.vmem %s4, 26
      %v1455 = vld [vmem:[%s1454] sm:$0x1]
      %v1457 = vlaneseq
      %v1458 = vshrl.u32 %v1457, 7
      %v1459 = vsub.s32 0, %v1458
      %v1460 = vrot.slane %v1455, %v1459
      %v1462 = vmul.f32 %v479, %v1460
      %v1463 = vmul.f32 %v480, %v1460
      %v1464 = vmul.f32 %v482, %v1460
      %v1465 = vmul.f32 %v483, %v1460
      %v1466 = vmul.f32 %v485, %v1460
      %v1467 = vmul.f32 %v486, %v1460
      %v1468 = vadd.f32 %v1448, %v1462
      %v1469 = vadd.f32 %v1449, %v1463
      %v1470 = vadd.f32 %v1450, %v1464
      %v1471 = vadd.f32 %v1451, %v1465
      %v1472 = vadd.f32 %v1452, %v1466
      %v1473 = vadd.f32 %v1453, %v1467
      %v1474 = vld [vmem:[%s5] sm:$0xff]
      %v1475 = vld [vmem:[%s5 + $0x8] sm:$0xff]
      %v1476 = vld [vmem:[%s5 + $0x10] sm:$0xff]
      %v1477 = vld [vmem:[%s5 + $0x18] sm:$0xff]
      %v1478 = vld [vmem:[%s5 + $0x20] sm:$0xff]
      %v1479 = vld [vmem:[%s5 + $0x28] sm:$0xff]
      %v1480 = vld [vmem:[%s5 + $0x30] sm:$0x1]
      %v1481 = vld [vmem:[%s6] sm:$0x1]
      %v1483 = vlaneseq
      %v1484 = vshrl.u32 %v1483, 7
      %v1485 = vsub.s32 0, %v1484
      %v1486 = vrot.slane %v1481, %v1485
      %vm1488 = vcmask 400384
      %v1490 = vsel %vm1488, %v1468, 0
      %v1493 = vsel %vm1488, %v1469, 0
      %v1496 = vsel %vm778, %v1480, 0
      %1498 = vmatprep.subr.mxu0 0.0
      %1499 = vmatpush1.msra.mxu0 0.0
      %1500 = vmatprep.subr.mxu0 0.0
      %1501 = vmatpush1.msra.mxu0 0.0
      %1502 = vmatprep.subr.mxu0 0.0
      %1503 = vmatpush1.msra.mxu0 0.0
      %1504 = vmatprep.subr.mxu0 0.0
      %1505 = vmatpush1.msra.mxu0 0.0
      %1506 = vmatprep.subr.mxu0 0.0
      %1507 = vmatpush1.msra.mxu0 0.0
      %1508 = vmatprep.subr.mxu0 0.0
      %1509 = vmatpush1.msra.mxu0 0.0
      %1510 = vmatprep.subr.mxu0 0.0
      %1511 = vmatpush1.msra.mxu0 0.0
      %1512 = vmatprep.subr.mxu0 0.0
      %1513 = vmatpush1.msra.mxu0 0.0
      %1514 = vmatprep.subr.mxu0 0.0
      %1515 = vmatpush1.msra.mxu0 0.0
      %1516 = vmatprep.subr.mxu0 0.0
      %1517 = vmatpush1.msra.mxu0 %v1496
      %1518 = vmatprep.subr.mxu0 0.0
      %1519 = vmatpush1.msra.mxu0 %v1479
      %1520 = vmatprep.subr.mxu0 0.0
      %1521 = vmatpush1.msra.mxu0 %v1478
      %1522 = vmatprep.subr.mxu0 0.0
      %1523 = vmatpush1.msra.mxu0 %v1477
      %1524 = vmatprep.subr.mxu0 0.0
      %1525 = vmatpush1.msra.mxu0 %v1476
      %1526 = vmatprep.subr.mxu0 0.0
      %1527 = vmatpush1.msra.mxu0 %v1475
      %1528 = vmatprep.subr.mxu0 0.0
      %1529 = vmatpush1.msra.mxu0 %v1474
      %1530 = vmatprep.subr.mxu0 0.0
      %1531 = vmatpush2.msra.mxu0 0.0
      %1532 = vmatprep.subr.mxu0 0.0
      %1533 = vmatpush2.msra.mxu0 0.0
      %1534 = vmatprep.subr.mxu0 0.0
      %1535 = vmatpush2.msra.mxu0 0.0
      %1536 = vmatprep.subr.mxu0 0.0
      %1537 = vmatpush2.msra.mxu0 0.0
      %1538 = vmatprep.subr.mxu0 0.0
      %1539 = vmatpush2.msra.mxu0 0.0
      %1540 = vmatprep.subr.mxu0 0.0
      %1541 = vmatpush2.msra.mxu0 0.0
      %1542 = vmatprep.subr.mxu0 0.0
      %1543 = vmatpush2.msra.mxu0 0.0
      %1544 = vmatprep.subr.mxu0 0.0
      %1545 = vmatpush2.msra.mxu0 0.0
      %1546 = vmatprep.subr.mxu0 0.0
      %1547 = vmatpush2.msra.mxu0 0.0
      %1548 = vmatprep.subr.mxu0 0.0
      %1549 = vmatpush2.msra.mxu0 0.0
      %1550 = vmatprep.subr.mxu0 0.0
      %1551 = vmatpush2.msra.mxu0 0.0
      %1552 = vmatprep.subr.mxu0 0.0
      %1553 = vmatpush2.msra.mxu0 0.0
      %1554 = vmatprep.subr.mxu0 0.0
      %1555 = vmatpush2.msra.mxu0 0.0
      %1556 = vmatprep.subr.mxu0 0.0
      %1557 = vmatpush2.msra.mxu0 0.0
      %1558 = vmatprep.subr.mxu0 0.0
      %1559 = vmatpush2.msra.mxu0 0.0
      %1560 = vmatprep.subr.mxu0 0.0
      %1561 = vmatpush2.msra.mxu0 0.0
      %1562 = vmatprep.mubr.f32.mxu0 0.0
      %1563 = vmatmul.mubr.f32.gmra.mxu0 %v1490
      %v1564 = vpop.f32.mrf.mxu0
      %v1565 = vadd.f32 %v1486, %v1564
      %v1566 = vpop.f32.mrf.mxu0
      %1567 = vmatprep.mubr.f32.mxu0 0.0
      %1568 = vmatmul.mubr.f32.gmra.mxu0 %v1493
      %v1569 = vpop.f32.mrf.mxu0
      %v1570 = vadd.f32 %v1486, %v1569
      %v1571 = vpop.f32.mrf.mxu0
      %1572 = vdwg.mxu0
      %v1573 = vmax.f32 %v1565, 0.0
      %v1574 = vmax.f32 %v1570, 0.0
      %v1575 = vld [vmem:[%s459] sm:$0xff]
      %v1576 = vld [vmem:[%s459 + $0x8] sm:$0x1]
      %1578 = vset.pattern.permute.xlu0 0
      %1579 = vperm.xlu0 %1578, %v1575
      %v1580 = vpop.permute.xlu0 %1579
      %1583 = vset.pattern.permute.xlu0 0
      %1584 = vperm.xlu0 %1583, %v1576
      %v1585 = vpop.permute.xlu0 %1584
      %v1587 = vmul.f32 %v1573, %v1580
      %v1588 = vmul.f32 %v1574, %v1585
      %vm1589 = vcmask 64512
      %1590 = vst.msk [vmem:[%s470] sm:$0xff] %vm1589, %v1587
      %vm1591 = vcmask 57344
      %1592 = vst.msk [vmem:[%s470 + $0x8] sm:$0x1] %vm1591, %v1588
      %v1594 = vsel %vm1488, %v1470, 0
      %v1597 = vsel %vm1488, %v1471, 0
      %1599 = vmatprep.subr.mxu0 0.0
      %1600 = vmatpush1.msra.mxu0 0.0
      %1601 = vmatprep.subr.mxu0 0.0
      %1602 = vmatpush1.msra.mxu0 0.0
      %1603 = vmatprep.subr.mxu0 0.0
      %1604 = vmatpush1.msra.mxu0 0.0
      %1605 = vmatprep.subr.mxu0 0.0
      %1606 = vmatpush1.msra.mxu0 0.0
      %1607 = vmatprep.subr.mxu0 0.0
      %1608 = vmatpush1.msra.mxu0 0.0
      %1609 = vmatprep.subr.mxu0 0.0
      %1610 = vmatpush1.msra.mxu0 0.0
      %1611 = vmatprep.subr.mxu0 0.0
      %1612 = vmatpush1.msra.mxu0 0.0
      %1613 = vmatprep.subr.mxu0 0.0
      %1614 = vmatpush1.msra.mxu0 0.0
      %1615 = vmatprep.subr.mxu0 0.0
      %1616 = vmatpush1.msra.mxu0 0.0
      %1617 = vmatprep.subr.mxu0 0.0
      %1618 = vmatpush1.msra.mxu0 %v1496
      %1619 = vmatprep.subr.mxu0 0.0
      %1620 = vmatpush1.msra.mxu0 %v1479
      %1621 = vmatprep.subr.mxu0 0.0
      %1622 = vmatpush1.msra.mxu0 %v1478
      %1623 = vmatprep.subr.mxu0 0.0
      %1624 = vmatpush1.msra.mxu0 %v1477
      %1625 = vmatprep.subr.mxu0 0.0
      %1626 = vmatpush1.msra.mxu0 %v1476
      %1627 = vmatprep.subr.mxu0 0.0
      %1628 = vmatpush1.msra.mxu0 %v1475
      %1629 = vmatprep.subr.mxu0 0.0
      %1630 = vmatpush1.msra.mxu0 %v1474
      %1631 = vmatprep.subr.mxu0 0.0
      %1632 = vmatpush2.msra.mxu0 0.0
      %1633 = vmatprep.subr.mxu0 0.0
      %1634 = vmatpush2.msra.mxu0 0.0
      %1635 = vmatprep.subr.mxu0 0.0
      %1636 = vmatpush2.msra.mxu0 0.0
      %1637 = vmatprep.subr.mxu0 0.0
      %1638 = vmatpush2.msra.mxu0 0.0
      %1639 = vmatprep.subr.mxu0 0.0
      %1640 = vmatpush2.msra.mxu0 0.0
      %1641 = vmatprep.subr.mxu0 0.0
      %1642 = vmatpush2.msra.mxu0 0.0
      %1643 = vmatprep.subr.mxu0 0.0
      %1644 = vmatpush2.msra.mxu0 0.0
      %1645 = vmatprep.subr.mxu0 0.0
      %1646 = vmatpush2.msra.mxu0 0.0
      %1647 = vmatprep.subr.mxu0 0.0
      %1648 = vmatpush2.msra.mxu0 0.0
      %1649 = vmatprep.subr.mxu0 0.0
      %1650 = vmatpush2.msra.mxu0 0.0
      %1651 = vmatprep.subr.mxu0 0.0
      %1652 = vmatpush2.msra.mxu0 0.0
      %1653 = vmatprep.subr.mxu0 0.0
      %1654 = vmatpush2.msra.mxu0 0.0
      %1655 = vmatprep.subr.mxu0 0.0
      %1656 = vmatpush2.msra.mxu0 0.0
      %1657 = vmatprep.subr.mxu0 0.0
      %1658 = vmatpush2.msra.mxu0 0.0
      %1659 = vmatprep.subr.mxu0 0.0
      %1660 = vmatpush2.msra.mxu0 0.0
      %1661 = vmatprep.subr.mxu0 0.0
      %1662 = vmatpush2.msra.mxu0 0.0
      %1663 = vmatprep.mubr.f32.mxu0 0.0
      %1664 = vmatmul.mubr.f32.gmra.mxu0 %v1594
      %v1665 = vpop.f32.mrf.mxu0
      %v1666 = vadd.f32 %v1486, %v1665
      %v1667 = vpop.f32.mrf.mxu0
      %1668 = vmatprep.mubr.f32.mxu0 0.0
      %1669 = vmatmul.mubr.f32.gmra.mxu0 %v1597
      %v1670 = vpop.f32.mrf.mxu0
      %v1671 = vadd.f32 %v1486, %v1670
      %v1672 = vpop.f32.mrf.mxu0
      %1673 = vdwg.mxu0
      %v1674 = vmax.f32 %v1666, 0.0
      %v1675 = vmax.f32 %v1671, 0.0
      %s1676 = scalar_lea.vmem %s459, 16
      %v1677 = vld [vmem:[%s1676] sm:$0xff]
      %v1678 = vld [vmem:[%s1676 + $0x8] sm:$0x1]
      %1680 = vset.pattern.permute.xlu0 0
      %1681 = vperm.xlu0 %1680, %v1677
      %v1682 = vpop.permute.xlu0 %1681
      %1685 = vset.pattern.permute.xlu0 0
      %1686 = vperm.xlu0 %1685, %v1678
      %v1687 = vpop.permute.xlu0 %1686
      %v1689 = vmul.f32 %v1674, %v1682
      %v1690 = vmul.f32 %v1675, %v1687
      %s1691 = scalar_lea.vmem %s470, 16
      %1692 = vst.msk [vmem:[%s1691] sm:$0xff] %vm1589, %v1689
      %1693 = vst.msk [vmem:[%s1691 + $0x8] sm:$0x1] %vm1591, %v1690
      %v1695 = vsel %vm1488, %v1472, 0
      %v1698 = vsel %vm1488, %v1473, 0
      %1700 = vmatprep.subr.mxu0 0.0
      %1701 = vmatpush1.msra.mxu0 0.0
      %1702 = vmatprep.subr.mxu0 0.0
      %1703 = vmatpush1.msra.mxu0 0.0
      %1704 = vmatprep.subr.mxu0 0.0
      %1705 = vmatpush1.msra.mxu0 0.0
      %1706 = vmatprep.subr.mxu0 0.0
      %1707 = vmatpush1.msra.mxu0 0.0
      %1708 = vmatprep.subr.mxu0 0.0
      %1709 = vmatpush1.msra.mxu0 0.0
      %1710 = vmatprep.subr.mxu0 0.0
      %1711 = vmatpush1.msra.mxu0 0.0
      %1712 = vmatprep.subr.mxu0 0.0
      %1713 = vmatpush1.msra.mxu0 0.0
      %1714 = vmatprep.subr.mxu0 0.0
      %1715 = vmatpush1.msra.mxu0 0.0
      %1716 = vmatprep.subr.mxu0 0.0
      %1717 = vmatpush1.msra.mxu0 0.0
      %1718 = vmatprep.subr.mxu0 0.0
      %1719 = vmatpush1.msra.mxu0 %v1496
      %1720 = vmatprep.subr.mxu0 0.0
      %1721 = vmatpush1.msra.mxu0 %v1479
      %1722 = vmatprep.subr.mxu0 0.0
      %1723 = vmatpush1.msra.mxu0 %v1478
      %1724 = vmatprep.subr.mxu0 0.0
      %1725 = vmatpush1.msra.mxu0 %v1477
      %1726 = vmatprep.subr.mxu0 0.0
      %1727 = vmatpush1.msra.mxu0 %v1476
      %1728 = vmatprep.subr.mxu0 0.0
      %1729 = vmatpush1.msra.mxu0 %v1475
      %1730 = vmatprep.subr.mxu0 0.0
      %1731 = vmatpush1.msra.mxu0 %v1474
      %1732 = vmatprep.subr.mxu0 0.0
      %1733 = vmatpush2.msra.mxu0 0.0
      %1734 = vmatprep.subr.mxu0 0.0
      %1735 = vmatpush2.msra.mxu0 0.0
      %1736 = vmatprep.subr.mxu0 0.0
      %1737 = vmatpush2.msra.mxu0 0.0
      %1738 = vmatprep.subr.mxu0 0.0
      %1739 = vmatpush2.msra.mxu0 0.0
      %1740 = vmatprep.subr.mxu0 0.0
      %1741 = vmatpush2.msra.mxu0 0.0
      %1742 = vmatprep.subr.mxu0 0.0
      %1743 = vmatpush2.msra.mxu0 0.0
      %1744 = vmatprep.subr.mxu0 0.0
      %1745 = vmatpush2.msra.mxu0 0.0
      %1746 = vmatprep.subr.mxu0 0.0
      %1747 = vmatpush2.msra.mxu0 0.0
      %1748 = vmatprep.subr.mxu0 0.0
      %1749 = vmatpush2.msra.mxu0 0.0
      %1750 = vmatprep.subr.mxu0 0.0
      %1751 = vmatpush2.msra.mxu0 0.0
      %1752 = vmatprep.subr.mxu0 0.0
      %1753 = vmatpush2.msra.mxu0 0.0
      %1754 = vmatprep.subr.mxu0 0.0
      %1755 = vmatpush2.msra.mxu0 0.0
      %1756 = vmatprep.subr.mxu0 0.0
      %1757 = vmatpush2.msra.mxu0 0.0
      %1758 = vmatprep.subr.mxu0 0.0
      %1759 = vmatpush2.msra.mxu0 0.0
      %1760 = vmatprep.subr.mxu0 0.0
      %1761 = vmatpush2.msra.mxu0 0.0
      %1762 = vmatprep.subr.mxu0 0.0
      %1763 = vmatpush2.msra.mxu0 0.0
      %1764 = vmatprep.mubr.f32.mxu0 0.0
      %1765 = vmatmul.mubr.f32.gmra.mxu0 %v1695
      %v1766 = vpop.f32.mrf.mxu0
      %v1767 = vadd.f32 %v1486, %v1766
      %v1768 = vpop.f32.mrf.mxu0
      %1769 = vmatprep.mubr.f32.mxu0 0.0
      %1770 = vmatmul.mubr.f32.gmra.mxu0 %v1698
      %v1771 = vpop.f32.mrf.mxu0
      %v1772 = vadd.f32 %v1486, %v1771
      %v1773 = vpop.f32.mrf.mxu0
      %1774 = vdwg.mxu0
      %v1775 = vmax.f32 %v1767, 0.0
      %v1776 = vmax.f32 %v1772, 0.0
      %s1777 = scalar_lea.vmem %s459, 32
      %v1778 = vld [vmem:[%s1777] sm:$0xff]
      %v1779 = vld [vmem:[%s1777 + $0x8] sm:$0x1]
      %1781 = vset.pattern.permute.xlu0 0
      %1782 = vperm.xlu0 %1781, %v1778
      %v1783 = vpop.permute.xlu0 %1782
      %1786 = vset.pattern.permute.xlu0 0
      %1787 = vperm.xlu0 %1786, %v1779
      %v1788 = vpop.permute.xlu0 %1787
      %v1790 = vmul.f32 %v1775, %v1783
      %v1791 = vmul.f32 %v1776, %v1788
      %s1792 = scalar_lea.vmem %s470, 32
      %1793 = vst.msk [vmem:[%s1792] sm:$0xff] %vm1589, %v1790
      %1794 = vst.msk [vmem:[%s1792 + $0x8] sm:$0x1] %vm1591, %v1791
      %s1795 = smul.u32 3, %s23
      %p1796 = scmp.lt.s32.totalorder %s22, 1
      %s1797 = scalar_select %p1796, %s22, 1
      %p1798 = scmp.lt.s32.totalorder %s1795, 2
      %s1799 = scalar_select %p1798, %s1795, 2
      %s1800 = smul.addr %s1799, 2
      %s1801 = smul.addr %s1797, 6
      %s1802 = sadd.s32 %s1800, %s1801
      %s1803 = smul.addr %s1802, 8
      %s1804 = scalar_lea.vmem %s7, %s1803
      // Predicated region
      $region49: #{drdb_sequential_forward.5} parent=47 // pred_check
        %p1805 = pneg %p239
      $region50: #{drdb_sequential_forward.5} parent=47 // pred_check_branch
        %1807 = sbr.rel (%p1805) target = $region52
      $region51: #{drdb_sequential_forward.5} parent=47 // pred_region
        %s1808 = smul.u32 3, %s23
      $region52: #{drdb_sequential_forward.5} parent=47 // pred_fallthru
        _
    $region48: #{drdb_sequential_forward.5} parent=5 // pred_fallthru
      _
    %p1809 = scmp.le.s32.totalorder 2, %s13
    // Predicated region
    $region53: #{drdb_sequential_forward.5} parent=5 // pred_check
      %p1810 = pneg %p1809
    $region54: #{drdb_sequential_forward.5} parent=5 // pred_check_branch
      %1812 = sbr.rel (%p1810) target = $region56
    $region55: #{drdb_sequential_forward.5} parent=5 // pred_region
      %s1813 = ssub.s32 %s13, 2
      // Predicated region
      $region57: #{drdb_sequential_forward.5} parent=55 // pred_check
        %p1814 = pneg %p245
      $region58: #{drdb_sequential_forward.5} parent=55 // pred_check_branch
        %1816 = sbr.rel (%p1814) target = $region60
      $region59: #{drdb_sequential_forward.5} parent=55 // pred_region
        %s1817 = smul.u32 3, %s25
        %p1818 = scmp.lt.s32.totalorder %s24, 1
        %s1819 = scalar_select %p1818, %s24, 1
        %p1820 = scmp.lt.s32.totalorder %s1817, 2
        %s1821 = scalar_select %p1820, %s1817, 2
        %s1822 = smul.addr %s1821, 2
        %s1823 = smul.addr %s1819, 6
        %s1824 = sadd.s32 %s1822, %s1823
        %s1825 = smul.addr %s1824, 8
        %s1826 = scalar_lea.vmem %s7, %s1825
      $region60: #{drdb_sequential_forward.5} parent=55 // pred_fallthru
        _
    $region56: #{drdb_sequential_forward.5} parent=5 // pred_fallthru
      _
  $region6: #{drdb_sequential_forward.5} parent=0 // loop_footer
    %s17 = sadd.s32 1, %s13
  $region7: #{drdb_sequential_forward.5} parent=0 // loop_footer_branch
    %12 = sbr.rel target = $region3
  $region8: #{drdb_sequential_forward.5} parent=0 // loop_exit
    _

// kernel: drdb_sequential_forward.9
$region0: #{drdb_sequential_forward.9}
  #allocation0 [shape = 'u32[]', space=smem, size = 0x4, offset = 0x4, fixed_abs, tag = 'smem constant byte address 0x4 - core index']
  #allocation1 [shape = 'u32[144,128]{1,0:T(1,128)}', space=vmem, size = 0x12000, scoped, tag = 'internal scratch']
  %s0 = inlined_call_operand.vmem [shape: f32[2,3,17,49], index: 0, kind: input, shape index: {}]
  %s1 = inlined_call_operand.vmem [shape: f32[49,17], index: 1, kind: input, shape index: {}]
  %s2 = inlined_call_operand.vmem [shape: f32[1,17], index: 2, kind: input, shape index: {}]
  %s3 = inlined_call_operand.vmem [shape: f32[2,3,17,17], index: 3, kind: output, shape index: {}]
  %s4 = sld [smem:[#allocation0]]
  $region45: #{drdb_sequential_forward.9} parent=0
    _
  %s6 = ssub.s32 1, %s4
  %s7 = scalar_select 0, %s6, %s4
  loop: start=0, step=1, limit=4
  $region2: #{drdb_sequential_forward.9} parent=0 // loop_pre_header
    _
  $region3: #{drdb_sequential_forward.9} parent=0 // loop_header
    %s9 = sphi 0, %s13
    %p10 = scmp.ge.s32.totalorder %s9, 4
    %s16 = sphi 0, %s28
    %s17 = sphi 0, %s24
    %s18 = sphi 0, %s16
    %s19 = sphi 0, %s17
    %s20 = sphi 0, %s18
    %s21 = sphi 0, %s19
    %s33 = sphi 0, %s35
    %s36 = sphi 0, %s33
    %s37 = sphi 0, %s36
    %s53 = sphi 0, %s37
    %s57 = sphi 0, %s57
    %s59 = sphi 0, %s57
    %s60 = sphi 0, %s59
    %s74 = sphi 0, %s60
    %s78 = sphi 0, %s78
    %s80 = sphi 0, %s78
    %s81 = sphi 0, %s80
    %s95 = sphi 0, %s81
    %s103 = sphi 0, %s105
    %s106 = sphi 0, %s103
    %s107 = sphi 0, %s106
    %s123 = sphi 0, %s107
  $region4: #{drdb_sequential_forward.9} parent=0 // loop_header_branch
    %12 = sbr.rel (%p10) target = $region8
  $region5: #{drdb_sequential_forward.9} parent=0 // loop_body
    %s14 = ssub.s32 %s9, 1
    %s15 = ssub.s32 %s9, 2
    %s22 = sadd.s32 1, %s17
    %p23 = scmp.ge.s32.totalorder %s22, 1
    %s24 = scalar_select %p23, 0, %s22
    %s25 = sadd.s32 1, %s16
    %s26 = scalar_select %p23, %s25, %s16
    %p27 = scmp.ge.s32.totalorder %s26, 2
    %s28 = scalar_select %p27, 0, %s26
    %s29 = ssub.s32 %s16, %s28
    %s30 = ssub.s32 %s17, %s24
    %s31 = sor.u32 %s29, %s30
    %p32 = scmp.eq.s32.totalorder %s31, 0
    %s34 = sadd.s32 %s33, 1
    %s35 = scalar_select %p32, %s33, %s34
    %p38 = pneg %p32
    %p39 = scmp.eq.s32.totalorder %s9, 1
    %p40 = por %p38, %p39
    %p41 = scmp.ne.s32.totalorder %s33, %s36
    %p42 = scmp.eq.s32.totalorder %s9, 0
    %p43 = por %p41, %p42
    %p44 = scmp.ne.s32.totalorder %s33, %s36
    %p45 = scmp.eq.s32.totalorder %s14, 1
    %p46 = por %p44, %p45
    %p47 = scmp.ne.s32.totalorder %s36, %s37
    %p48 = scmp.eq.s32.totalorder %s14, 0
    %p49 = por %p47, %p48
    %p50 = scmp.ne.s32.totalorder %s36, %s37
    %p51 = scmp.eq.s32.totalorder %s15, 1
    %p52 = por %p50, %p51
    %p54 = scmp.ne.s32.totalorder %s37, %s53
    %p55 = scmp.eq.s32.totalorder %s15, 0
    %p56 = por %p54, %p55
    %s58 = sadd.s32 %s57, 1
    %p61 = scmp.eq.s32.totalorder %s9, 1
    %p62 = scmp.ne.s32.totalorder %s57, %s59
    %p63 = scmp.eq.s32.totalorder %s9, 0
    %p64 = por %p62, %p63
    %p65 = scmp.ne.s32.totalorder %s57, %s59
    %p66 = scmp.eq.s32.totalorder %s14, 1
    %p67 = por %p65, %p66
    %p68 = scmp.ne.s32.totalorder %s59, %s60
    %p69 = scmp.eq.s32.totalorder %s14, 0
    %p70 = por %p68, %p69
    %p71 = scmp.ne.s32.totalorder %s59, %s60
    %p72 = scmp.eq.s32.totalorder %s15, 1
    %p73 = por %p71, %p72
    %p75 = scmp.ne.s32.totalorder %s60, %s74
    %p76 = scmp.eq.s32.totalorder %s15, 0
    %p77 = por %p75, %p76
    %s79 = sadd.s32 %s78, 1
    %p82 = scmp.eq.s32.totalorder %s9, 1
    %p83 = scmp.ne.s32.totalorder %s78, %s80
    %p84 = scmp.eq.s32.totalorder %s9, 0
    %p85 = por %p83, %p84
    %p86 = scmp.ne.s32.totalorder %s78, %s80
    %p87 = scmp.eq.s32.totalorder %s14, 1
    %p88 = por %p86, %p87
    %p89 = scmp.ne.s32.totalorder %s80, %s81
    %p90 = scmp.eq.s32.totalorder %s14, 0
    %p91 = por %p89, %p90
    %p92 = scmp.ne.s32.totalorder %s80, %s81
    %p93 = scmp.eq.s32.totalorder %s15, 1
    %p94 = por %p92, %p93
    %p96 = scmp.ne.s32.totalorder %s81, %s95
    %p97 = scmp.eq.s32.totalorder %s15, 0
    %p98 = por %p96, %p97
    %s99 = ssub.s32 %s16, %s28
    %s100 = ssub.s32 %s17, %s24
    %s101 = sor.u32 %s99, %s100
    %p102 = scmp.eq.s32.totalorder %s101, 0
    %s104 = sadd.s32 %s103, 1
    %s105 = scalar_select %p102, %s103, %s104
    %p108 = pneg %p102
    %p109 = scmp.eq.s32.totalorder %s9, 1
    %p110 = por %p108, %p109
    %p111 = scmp.ne.s32.totalorder %s103, %s106
    %p112 = scmp.eq.s32.totalorder %s9, 0
    %p113 = por %p111, %p112
    %p114 = scmp.ne.s32.totalorder %s103, %s106
    %p115 = scmp.eq.s32.totalorder %s14, 1
    %p116 = por %p114, %p115
    %p117 = scmp.ne.s32.totalorder %s106, %s107
    %p118 = scmp.eq.s32.totalorder %s14, 0
    %p119 = por %p117, %p118
    %p120 = scmp.ne.s32.totalorder %s106, %s107
    %p121 = scmp.eq.s32.totalorder %s15, 1
    %p122 = por %p120, %p121
    %p124 = scmp.ne.s32.totalorder %s107, %s123
    %p125 = scmp.eq.s32.totalorder %s15, 0
    %p126 = por %p124, %p125
    %p127 = scmp.le.s32.totalorder 1, %s9
    %p128 = scmp.lt.s32.totalorder %s9, 3
    %p129 = pnand %p127, %p128
    %p130 = pneg %p129
    // Predicated region
    $region9: #{drdb_sequential_forward.9} parent=5 // pred_check
      _
    $region10: #{drdb_sequential_forward.9} parent=5 // pred_check_branch
      %132 = sbr.rel (%p129) target = $region12
    $region11: #{drdb_sequential_forward.9} parent=5 // pred_region
      %s133 = ssub.s32 %s9, 1
      // Predicated region
      $region13: #{drdb_sequential_forward.9} parent=11 // pred_check
        %p134 = pneg %p70
      $region14: #{drdb_sequential_forward.9} parent=11 // pred_check_branch
        %136 = sbr.rel (%p134) target = $region16
      $region15: #{drdb_sequential_forward.9} parent=11 // pred_region
        _
      $region16: #{drdb_sequential_forward.9} parent=11 // pred_fallthru
        _
      // Predicated region
      $region17: #{drdb_sequential_forward.9} parent=11 // pred_check
        %p137 = pneg %p91
      $region18: #{drdb_sequential_forward.9} parent=11 // pred_check_branch
        %139 = sbr.rel (%p137) target = $region20
      $region19: #{drdb_sequential_forward.9} parent=11 // pred_region
        _
      $region20: #{drdb_sequential_forward.9} parent=11 // pred_fallthru
        _
    $region12: #{drdb_sequential_forward.9} parent=5 // pred_fallthru
      _
    %p140 = scmp.lt.s32.totalorder %s9, 2
    // Predicated region
    $region21: #{drdb_sequential_forward.9} parent=5 // pred_check
      %p141 = pneg %p140
    $region22: #{drdb_sequential_forward.9} parent=5 // pred_check_branch
      %143 = sbr.rel (%p141) target = $region24
    $region23: #{drdb_sequential_forward.9} parent=5 // pred_region
      // Predicated region
      $region25: #{drdb_sequential_forward.9} parent=23 // pred_check
        %p144 = pneg %p43
      $region26: #{drdb_sequential_forward.9} parent=23 // pred_check_branch
        %146 = sbr.rel (%p144) target = $region28
      $region27: #{drdb_sequential_forward.9} parent=23 // pred_region
        %s147 = smul.u32 3, %s17
        %p148 = scmp.lt.s32.totalorder %s16, 1
        %s149 = scalar_select %p148, %s16, 1
        %p150 = scmp.lt.s32.totalorder %s147, 2
        %s151 = scalar_select %p150, %s147, 2
        %s152 = smul.addr %s151, 3
        %s153 = smul.addr %s149, 9
        %s154 = sadd.s32 %s152, %s153
        %s155 = smul.addr %s154, 8
        %s156 = scalar_lea.vmem %s0, %s155
        %s157 = smul.u32 3, %s17
      $region28: #{drdb_sequential_forward.9} parent=23 // pred_fallthru
        _
    $region24: #{drdb_sequential_forward.9} parent=5 // pred_fallthru
      _
    %p158 = scmp.le.s32.totalorder 1, %s9
    %p159 = scmp.lt.s32.totalorder %s9, 3
    %p160 = pnand %p158, %p159
    %p161 = pneg %p160
    // Predicated region
    $region29: #{drdb_sequential_forward.9} parent=5 // pred_check
      _
    $region30: #{drdb_sequential_forward.9} parent=5 // pred_check_branch
      %163 = sbr.rel (%p160) target = $region32
    $region31: #{drdb_sequential_forward.9} parent=5 // pred_region
      %s164 = ssub.s32 %s9, 1
      %s165 = smul.u32 3, %s19
      %p166 = scmp.lt.s32.totalorder %s18, 1
      %s167 = scalar_select %p166, %s18, 1
      %p168 = scmp.lt.s32.totalorder %s165, 2
      %s169 = scalar_select %p168, %s165, 2
      %s170 = smul.addr %s169, 3
      %s171 = smul.addr %s167, 9
      %s172 = sadd.s32 %s170, %s171
      %s173 = smul.addr %s172, 8
      %s174 = scalar_lea.vmem %s0, %s173
      %p175 = pneg %p49
      %p176 = pneg %p46
      %p177 = pneg %p70
      %p178 = pneg %p67
      %p179 = pneg %p91
      %p180 = pneg %p88
      %p181 = pneg %p119
      %p182 = pneg %p116
      %s183 = smul.u32 3, %s19
      %p184 = scmp.lt.s32.totalorder %s18, 1
      %s185 = scalar_select %p184, %s18, 1
      %p186 = scmp.lt.s32.totalorder %s183, 2
      %s187 = scalar_select %p186, %s183, 2
      %s188 = smul.addr %s187, 3
      %s189 = smul.addr %s185, 9
      %s190 = sadd.s32 %s188, %s189
      %s191 = smul.addr %s190, 8
      %s192 = scalar_lea.vmem %s3, %s191
      %s193 = smul.u32 3, %s19
      %p194 = scmp.lt.s32.totalorder %s18, 1
      %s195 = scalar_select %p194, %s18, 1
      %p196 = scmp.lt.s32.totalorder %s193, 2
      %s197 = scalar_select %p196, %s193, 2
      %s198 = smul.addr %s197, 3
      %s199 = smul.addr %s195, 9
      %s200 = sadd.s32 %s198, %s199
      %s201 = smul.addr %s200, 8
      %s202 = scalar_lea.vmem %s0, %s201
      %s203 = smul.u32 3, %s19
      %s204 = smul.u32 3, %s19
      %p205 = scmp.lt.s32.totalorder %s18, 1
      %s206 = scalar_select %p205, %s18, 1
      %p207 = scmp.lt.s32.totalorder %s204, 2
      %s208 = scalar_select %p207, %s204, 2
      %s209 = smul.addr %s208, 3
      %s210 = smul.addr %s206, 9
      %s211 = sadd.s32 %s209, %s210
      %s212 = smul.addr %s211, 8
      %s213 = scalar_lea.vmem %s3, %s212
      %s214 = smul.u32 3, %s19
      %v215 = vld [vmem:[%s1] sm:$0xff]
      %v216 = vld [vmem:[%s1 + $0x8] sm:$0xff]
      %v217 = vld [vmem:[%s1 + $0x10] sm:$0xff]
      %v218 = vld [vmem:[%s1 + $0x18] sm:$0xff]
      %v219 = vld [vmem:[%s1 + $0x20] sm:$0xff]
      %v220 = vld [vmem:[%s1 + $0x28] sm:$0xff]
      %v221 = vld [vmem:[%s1 + $0x30] sm:$0x1]
      %v222 = vld [vmem:[%s2] sm:$0x1]
      %v223 = vld [vmem:[%s202] sm:$0xff]
      %v224 = vld [vmem:[%s202 + $0x8] sm:$0xff]
      %v225 = vld [vmem:[%s202 + $0x10] sm:$0x1]
      %v227 = vlaneseq
      %v228 = vshrl.u32 %v227, 7
      %v229 = vsub.s32 0, %v228
      %v230 = vrot.slane %v222, %v229
      %vm232 = vcmask 400384
      %v234 = vsel %vm232, %v223, 0
      %v237 = vsel %vm232, %v224, 0
      %v240 = vsel %vm232, %v225, 0
      %vm242 = vcmask 1040384
      %v244 = vsel %vm242, %v221, 0
      %246 = vmatprep.subr.mxu0 0.0
      %247 = vmatpush1.msra.mxu0 0.0
      %248 = vmatprep.subr.mxu0 0.0
      %249 = vmatpush1.msra.mxu0 0.0
      %250 = vmatprep.subr.mxu0 0.0
      %251 = vmatpush1.msra.mxu0 0.0
      %252 = vmatprep.subr.mxu0 0.0
      %253 = vmatpush1.msra.mxu0 0.0
      %254 = vmatprep.subr.mxu0 0.0
      %255 = vmatpush1.msra.mxu0 0.0
      %256 = vmatprep.subr.mxu0 0.0
      %257 = vmatpush1.msra.mxu0 0.0
      %258 = vmatprep.subr.mxu0 0.0
      %259 = vmatpush1.msra.mxu0 0.0
      %260 = vmatprep.subr.mxu0 0.0
      %261 = vmatpush1.msra.mxu0 0.0
      %262 = vmatprep.subr.mxu0 0.0
      %263 = vmatpush1.msra.mxu0 0.0
      %264 = vmatprep.subr.mxu0 0.0
      %265 = vmatpush1.msra.mxu0 %v244
      %266 = vmatprep.subr.mxu0 0.0
      %267 = vmatpush1.msra.mxu0 %v220
      %268 = vmatprep.subr.mxu0 0.0
      %269 = vmatpush1.msra.mxu0 %v219
      %270 = vmatprep.subr.mxu0 0.0
      %271 = vmatpush1.msra.mxu0 %v218
      %272 = vmatprep.subr.mxu0 0.0
      %273 = vmatpush1.msra.mxu0 %v217
      %274 = vmatprep.subr.mxu0 0.0
      %275 = vmatpush1.msra.mxu0 %v216
      %276 = vmatprep.subr.mxu0 0.0
      %277 = vmatpush1.msra.mxu0 %v215
      %278 = vmatprep.subr.mxu0 0.0
      %279 = vmatpush2.msra.mxu0 0.0
      %280 = vmatprep.subr.mxu0 0.0
      %281 = vmatpush2.msra.mxu0 0.0
      %282 = vmatprep.subr.mxu0 0.0
      %283 = vmatpush2.msra.mxu0 0.0
      %284 = vmatprep.subr.mxu0 0.0
      %285 = vmatpush2.msra.mxu0 0.0
      %286 = vmatprep.subr.mxu0 0.0
      %287 = vmatpush2.msra.mxu0 0.0
      %288 = vmatprep.subr.mxu0 0.0
      %289 = vmatpush2.msra.mxu0 0.0
      %290 = vmatprep.subr.mxu0 0.0
      %291 = vmatpush2.msra.mxu0 0.0
      %292 = vmatprep.subr.mxu0 0.0
      %293 = vmatpush2.msra.mxu0 0.0
      %294 = vmatprep.subr.mxu0 0.0
      %295 = vmatpush2.msra.mxu0 0.0
      %296 = vmatprep.subr.mxu0 0.0
      %297 = vmatpush2.msra.mxu0 0.0
      %298 = vmatprep.subr.mxu0 0.0
      %299 = vmatpush2.msra.mxu0 0.0
      %300 = vmatprep.subr.mxu0 0.0
      %301 = vmatpush2.msra.mxu0 0.0
      %302 = vmatprep.subr.mxu0 0.0
      %303 = vmatpush2.msra.mxu0 0.0
      %304 = vmatprep.subr.mxu0 0.0
      %305 = vmatpush2.msra.mxu0 0.0
      %306 = vmatprep.subr.mxu0 0.0
      %307 = vmatpush2.msra.mxu0 0.0
      %308 = vmatprep.subr.mxu0 0.0
      %309 = vmatpush2.msra.mxu0 0.0
      %310 = vmatprep.mubr.f32.mxu0 0.0
      %311 = vmatmul.mubr.f32.gmra.mxu0 %v234
      %v312 = vpop.f32.mrf.mxu0
      %v313 = vadd.f32 %v230, %v312
      %v314 = vpop.f32.mrf.mxu0
      %315 = vmatprep.mubr.f32.mxu0 0.0
      %316 = vmatmul.mubr.f32.gmra.mxu0 %v237
      %v317 = vpop.f32.mrf.mxu0
      %v318 = vadd.f32 %v230, %v317
      %v319 = vpop.f32.mrf.mxu0
      %320 = vmatprep.mubr.f32.mxu0 0.0
      %321 = vmatmul.mubr.f32.gmra.mxu0 %v240
      %v322 = vpop.f32.mrf.mxu0
      %v323 = vadd.f32 %v230, %v322
      %v324 = vpop.f32.mrf.mxu0
      %325 = vdwg.mxu0
      %v326 = vmax.f32 %v313, 0.0
      %v327 = vmax.f32 %v318, 0.0
      %v328 = vmax.f32 %v323, 0.0
      %v329 = vadd.f32 %v326, %v223
      %v330 = vadd.f32 %v327, %v224
      %v331 = vadd.f32 %v328, %v225
      %vm332 = vcmask 138240
      %333 = vst.msk [vmem:[%s213] sm:$0xff] %vm332, %v329
      %334 = vst.msk [vmem:[%s213 + $0x8] sm:$0xff] %vm332, %v330
      %vm335 = vcmask 131072
      %336 = vst.msk [vmem:[%s213 + $0x10] sm:$0x1] %vm335, %v331
      %s337 = scalar_lea.vmem %s202, 24
      %v338 = vld [vmem:[%s337] sm:$0xff]
      %v339 = vld [vmem:[%s337 + $0x8] sm:$0xff]
      %v340 = vld [vmem:[%s337 + $0x10] sm:$0x1]
      %v342 = vsel %vm232, %v338, 0
      %v345 = vsel %vm232, %v339, 0
      %v348 = vsel %vm232, %v340, 0
      %350 = vmatprep.subr.mxu0 0.0
      %351 = vmatpush1.msra.mxu0 0.0
      %352 = vmatprep.subr.mxu0 0.0
      %353 = vmatpush1.msra.mxu0 0.0
      %354 = vmatprep.subr.mxu0 0.0
      %355 = vmatpush1.msra.mxu0 0.0
      %356 = vmatprep.subr.mxu0 0.0
      %357 = vmatpush1.msra.mxu0 0.0
      %358 = vmatprep.subr.mxu0 0.0
      %359 = vmatpush1.msra.mxu0 0.0
      %360 = vmatprep.subr.mxu0 0.0
      %361 = vmatpush1.msra.mxu0 0.0
      %362 = vmatprep.subr.mxu0 0.0
      %363 = vmatpush1.msra.mxu0 0.0
      %364 = vmatprep.subr.mxu0 0.0
      %365 = vmatpush1.msra.mxu0 0.0
      %366 = vmatprep.subr.mxu0 0.0
      %367 = vmatpush1.msra.mxu0 0.0
      %368 = vmatprep.subr.mxu0 0.0
      %369 = vmatpush1.msra.mxu0 %v244
      %370 = vmatprep.subr.mxu0 0.0
      %371 = vmatpush1.msra.mxu0 %v220
      %372 = vmatprep.subr.mxu0 0.0
      %373 = vmatpush1.msra.mxu0 %v219
      %374 = vmatprep.subr.mxu0 0.0
      %375 = vmatpush1.msra.mxu0 %v218
      %376 = vmatprep.subr.mxu0 0.0
      %377 = vmatpush1.msra.mxu0 %v217
      %378 = vmatprep.subr.mxu0 0.0
      %379 = vmatpush1.msra.mxu0 %v216
      %380 = vmatprep.subr.mxu0 0.0
      %381 = vmatpush1.msra.mxu0 %v215
      %382 = vmatprep.subr.mxu0 0.0
      %383 = vmatpush2.msra.mxu0 0.0
      %384 = vmatprep.subr.mxu0 0.0
      %385 = vmatpush2.msra.mxu0 0.0
      %386 = vmatprep.subr.mxu0 0.0
      %387 = vmatpush2.msra.mxu0 0.0
      %388 = vmatprep.subr.mxu0 0.0
      %389 = vmatpush2.msra.mxu0 0.0
      %390 = vmatprep.subr.mxu0 0.0
      %391 = vmatpush2.msra.mxu0 0.0
      %392 = vmatprep.subr.mxu0 0.0
      %393 = vmatpush2.msra.mxu0 0.0
      %394 = vmatprep.subr.mxu0 0.0
      %395 = vmatpush2.msra.mxu0 0.0
      %396 = vmatprep.subr.mxu0 0.0
      %397 = vmatpush2.msra.mxu0 0.0
      %398 = vmatprep.subr.mxu0 0.0
      %399 = vmatpush2.msra.mxu0 0.0
      %400 = vmatprep.subr.mxu0 0.0
      %401 = vmatpush2.msra.mxu0 0.0
      %402 = vmatprep.subr.mxu0 0.0
      %403 = vmatpush2.msra.mxu0 0.0
      %404 = vmatprep.subr.mxu0 0.0
      %405 = vmatpush2.msra.mxu0 0.0
      %406 = vmatprep.subr.mxu0 0.0
      %407 = vmatpush2.msra.mxu0 0.0
      %408 = vmatprep.subr.mxu0 0.0
      %409 = vmatpush2.msra.mxu0 0.0
      %410 = vmatprep.subr.mxu0 0.0
      %411 = vmatpush2.msra.mxu0 0.0
      %412 = vmatprep.subr.mxu0 0.0
      %413 = vmatpush2.msra.mxu0 0.0
      %414 = vmatprep.mubr.f32.mxu0 0.0
      %415 = vmatmul.mubr.f32.gmra.mxu0 %v342
      %v416 = vpop.f32.mrf.mxu0
      %v417 = vadd.f32 %v230, %v416
      %v418 = vpop.f32.mrf.mxu0
      %419 = vmatprep.mubr.f32.mxu0 0.0
      %420 = vmatmul.mubr.f32.gmra.mxu0 %v345
      %v421 = vpop.f32.mrf.mxu0
      %v422 = vadd.f32 %v230, %v421
      %v423 = vpop.f32.mrf.mxu0
      %424 = vmatprep.mubr.f32.mxu0 0.0
      %425 = vmatmul.mubr.f32.gmra.mxu0 %v348
      %v426 = vpop.f32.mrf.mxu0
      %v427 = vadd.f32 %v230, %v426
      %v428 = vpop.f32.mrf.mxu0
      %429 = vdwg.mxu0
      %v430 = vmax.f32 %v417, 0.0
      %v431 = vmax.f32 %v422, 0.0
      %v432 = vmax.f32 %v427, 0.0
      %v433 = vadd.f32 %v430, %v338
      %v434 = vadd.f32 %v431, %v339
      %v435 = vadd.f32 %v432, %v340
      %s436 = scalar_lea.vmem %s213, 24
      %437 = vst.msk [vmem:[%s436] sm:$0xff] %vm332, %v433
      %438 = vst.msk [vmem:[%s436 + $0x8] sm:$0xff] %vm332, %v434
      %439 = vst.msk [vmem:[%s436 + $0x10] sm:$0x1] %vm335, %v435
      %s440 = scalar_lea.vmem %s202, 48
      %v441 = vld [vmem:[%s440] sm:$0xff]
      %v442 = vld [vmem:[%s440 + $0x8] sm:$0xff]
      %v443 = vld [vmem:[%s440 + $0x10] sm:$0x1]
      %v445 = vsel %vm232, %v441, 0
      %v448 = vsel %vm232, %v442, 0
      %v451 = vsel %vm232, %v443, 0
      %453 = vmatprep.subr.mxu0 0.0
      %454 = vmatpush1.msra.mxu0 0.0
      %455 = vmatprep.subr.mxu0 0.0
      %456 = vmatpush1.msra.mxu0 0.0
      %457 = vmatprep.subr.mxu0 0.0
      %458 = vmatpush1.msra.mxu0 0.0
      %459 = vmatprep.subr.mxu0 0.0
      %460 = vmatpush1.msra.mxu0 0.0
      %461 = vmatprep.subr.mxu0 0.0
      %462 = vmatpush1.msra.mxu0 0.0
      %463 = vmatprep.subr.mxu0 0.0
      %464 = vmatpush1.msra.mxu0 0.0
      %465 = vmatprep.subr.mxu0 0.0
      %466 = vmatpush1.msra.mxu0 0.0
      %467 = vmatprep.subr.mxu0 0.0
      %468 = vmatpush1.msra.mxu0 0.0
      %469 = vmatprep.subr.mxu0 0.0
      %470 = vmatpush1.msra.mxu0 0.0
      %471 = vmatprep.subr.mxu0 0.0
      %472 = vmatpush1.msra.mxu0 %v244
      %473 = vmatprep.subr.mxu0 0.0
      %474 = vmatpush1.msra.mxu0 %v220
      %475 = vmatprep.subr.mxu0 0.0
      %476 = vmatpush1.msra.mxu0 %v219
      %477 = vmatprep.subr.mxu0 0.0
      %478 = vmatpush1.msra.mxu0 %v218
      %479 = vmatprep.subr.mxu0 0.0
      %480 = vmatpush1.msra.mxu0 %v217
      %481 = vmatprep.subr.mxu0 0.0
      %482 = vmatpush1.msra.mxu0 %v216
      %483 = vmatprep.subr.mxu0 0.0
      %484 = vmatpush1.msra.mxu0 %v215
      %485 = vmatprep.subr.mxu0 0.0
      %486 = vmatpush2.msra.mxu0 0.0
      %487 = vmatprep.subr.mxu0 0.0
      %488 = vmatpush2.msra.mxu0 0.0
      %489 = vmatprep.subr.mxu0 0.0
      %490 = vmatpush2.msra.mxu0 0.0
      %491 = vmatprep.subr.mxu0 0.0
      %492 = vmatpush2.msra.mxu0 0.0
      %493 = vmatprep.subr.mxu0 0.0
      %494 = vmatpush2.msra.mxu0 0.0
      %495 = vmatprep.subr.mxu0 0.0
      %496 = vmatpush2.msra.mxu0 0.0
      %497 = vmatprep.subr.mxu0 0.0
      %498 = vmatpush2.msra.mxu0 0.0
      %499 = vmatprep.subr.mxu0 0.0
      %500 = vmatpush2.msra.mxu0 0.0
      %501 = vmatprep.subr.mxu0 0.0
      %502 = vmatpush2.msra.mxu0 0.0
      %503 = vmatprep.subr.mxu0 0.0
      %504 = vmatpush2.msra.mxu0 0.0
      %505 = vmatprep.subr.mxu0 0.0
      %506 = vmatpush2.msra.mxu0 0.0
      %507 = vmatprep.subr.mxu0 0.0
      %508 = vmatpush2.msra.mxu0 0.0
      %509 = vmatprep.subr.mxu0 0.0
      %510 = vmatpush2.msra.mxu0 0.0
      %511 = vmatprep.subr.mxu0 0.0
      %512 = vmatpush2.msra.mxu0 0.0
      %513 = vmatprep.subr.mxu0 0.0
      %514 = vmatpush2.msra.mxu0 0.0
      %515 = vmatprep.subr.mxu0 0.0
      %516 = vmatpush2.msra.mxu0 0.0
      %517 = vmatprep.mubr.f32.mxu0 0.0
      %518 = vmatmul.mubr.f32.gmra.mxu0 %v445
      %v519 = vpop.f32.mrf.mxu0
      %v520 = vadd.f32 %v230, %v519
      %v521 = vpop.f32.mrf.mxu0
      %522 = vmatprep.mubr.f32.mxu0 0.0
      %523 = vmatmul.mubr.f32.gmra.mxu0 %v448
      %v524 = vpop.f32.mrf.mxu0
      %v525 = vadd.f32 %v230, %v524
      %v526 = vpop.f32.mrf.mxu0
      %527 = vmatprep.mubr.f32.mxu0 0.0
      %528 = vmatmul.mubr.f32.gmra.mxu0 %v451
      %v529 = vpop.f32.mrf.mxu0
      %v530 = vadd.f32 %v230, %v529
      %v531 = vpop.f32.mrf.mxu0
      %532 = vdwg.mxu0
      %v533 = vmax.f32 %v520, 0.0
      %v534 = vmax.f32 %v525, 0.0
      %v535 = vmax.f32 %v530, 0.0
      %v536 = vadd.f32 %v533, %v441
      %v537 = vadd.f32 %v534, %v442
      %v538 = vadd.f32 %v535, %v443
      %s539 = scalar_lea.vmem %s213, 48
      %540 = vst.msk [vmem:[%s539] sm:$0xff] %vm332, %v536
      %541 = vst.msk [vmem:[%s539 + $0x8] sm:$0xff] %vm332, %v537
      %542 = vst.msk [vmem:[%s539 + $0x10] sm:$0x1] %vm335, %v538
      %s543 = smul.u32 3, %s19
      %p544 = scmp.lt.s32.totalorder %s18, 1
      %s545 = scalar_select %p544, %s18, 1
      %p546 = scmp.lt.s32.totalorder %s543, 2
      %s547 = scalar_select %p546, %s543, 2
      %s548 = smul.addr %s547, 3
      %s549 = smul.addr %s545, 9
      %s550 = sadd.s32 %s548, %s549
      %s551 = smul.addr %s550, 8
      %s552 = scalar_lea.vmem %s3, %s551
      // Predicated region
      $region33: #{drdb_sequential_forward.9} parent=31 // pred_check
        %p553 = pneg %p116
      $region34: #{drdb_sequential_forward.9} parent=31 // pred_check_branch
        %555 = sbr.rel (%p553) target = $region36
      $region35: #{drdb_sequential_forward.9} parent=31 // pred_region
        %s556 = smul.u32 3, %s19
      $region36: #{drdb_sequential_forward.9} parent=31 // pred_fallthru
        _
    $region32: #{drdb_sequential_forward.9} parent=5 // pred_fallthru
      _
    %p557 = scmp.le.s32.totalorder 2, %s9
    // Predicated region
    $region37: #{drdb_sequential_forward.9} parent=5 // pred_check
      %p558 = pneg %p557
    $region38: #{drdb_sequential_forward.9} parent=5 // pred_check_branch
      %560 = sbr.rel (%p558) target = $region40
    $region39: #{drdb_sequential_forward.9} parent=5 // pred_region
      %s561 = ssub.s32 %s9, 2
      // Predicated region
      $region41: #{drdb_sequential_forward.9} parent=39 // pred_check
        %p562 = pneg %p122
      $region42: #{drdb_sequential_forward.9} parent=39 // pred_check_branch
        %564 = sbr.rel (%p562) target = $region44
      $region43: #{drdb_sequential_forward.9} parent=39 // pred_region
        %s565 = smul.u32 3, %s21
        %p566 = scmp.lt.s32.totalorder %s20, 1
        %s567 = scalar_select %p566, %s20, 1
        %p568 = scmp.lt.s32.totalorder %s565, 2
        %s569 = scalar_select %p568, %s565, 2
        %s570 = smul.addr %s569, 3
        %s571 = smul.addr %s567, 9
        %s572 = sadd.s32 %s570, %s571
        %s573 = smul.addr %s572, 8
        %s574 = scalar_lea.vmem %s3, %s573
      $region44: #{drdb_sequential_forward.9} parent=39 // pred_fallthru
        _
    $region40: #{drdb_sequential_forward.9} parent=5 // pred_fallthru
      _
  $region6: #{drdb_sequential_forward.9} parent=0 // loop_footer
    %s13 = sadd.s32 1, %s9
  $region7: #{drdb_sequential_forward.9} parent=0 // loop_footer_branch
    %8 = sbr.rel target = $region3
  $region8: #{drdb_sequential_forward.9} parent=0 // loop_exit
    _

</llo_original>
